<compile_context>
chip_gen: v7x
topology: tpu7x:2x2x1
jax: 0.10.0
libtpu: 0.0.40
codegen_flags: <defaults>
</compile_context>

<pallas_src>
import functools

import jax
import jax.numpy as jnp
import numpy as np
from jax import lax
from jax.experimental import pallas as pl
from jax.experimental.pallas import tpu as pltpu

RATES = (6, 12, 18)
BN_EPS = 1e-5


# --------------------------------------------------------------------------
# Small helpers
# --------------------------------------------------------------------------
def _mo(idx, mult):
    """Divisibility hint for traced indices; pass-through for Python ints."""
    return idx if isinstance(idx, int) else pl.multiple_of(idx, mult)


def _for_each_image(nb_count, body, unroll_limit=8):
    """Loop over folded images: static unroll when small, lax.fori_loop when
    large so live ranges and code size stay bounded (review item)."""
    if nb_count <= unroll_limit:
        for nb in range(nb_count):
            body(nb)
    else:
        lax.fori_loop(0, nb_count, lambda nb, c: (body(nb), c)[1], 0)


def _active_taps(rate, Hd, Wd):
    """Taps of the dilated 3x3 kernel whose window intersects the image.
    Center tap first (its col block is shared across rates); taps landing
    entirely in the zero padding are dropped together with their weight rows
    (bit-identical: they only ever multiply zeros)."""
    taps = [(1, 1, 0, 0)]
    for kh in range(3):
        for kw in range(3):
            dh, dw = (kh - 1) * rate, (kw - 1) * rate
            if (dh, dw) != (0, 0) and abs(dh) < Hd and abs(dw) < Wd:
                taps.append((kh, kw, dh, dw))
    return tuple(taps)


def _flatten_branch_weight(w_oihw, taps):
    """(Cout, Cin, 3, 3) OIHW -> (len(taps)*Cin, Cout), tap-major / cin-minor,
    matching the im2col column layout."""
    blocks = [jnp.transpose(w_oihw[:, :, kh, kw], (1, 0)) for kh, kw, _, _ in taps]
    return jnp.concatenate(blocks, axis=0)


def _pick_batch_fold(N, HW, target_m):
    """Largest divisor NB of N with NB*HW <= target_m (fills the MXU M dim),
    while keeping G = N/NB >= 2 whenever N >= 2 so the "parallel" grid axis can
    shard across both v7x TensorCores."""
    min_g = 2 if N >= 2 else 1
    best = 1
    for d in range(1, N + 1):
        if N % d == 0 and d * HW <= max(target_m, HW) and N // d >= min_g:
            best = d
    return best


def _default_vmem_limit():
    """~3/4 of physical VMEM, capped at 96 MiB: leaves pipeline-buffer headroom
    on v7x (64 MiB physical) while opening up v5e/v6e's 128 MiB."""
    try:
        cap = pltpu.get_tpu_info().vmem_capacity_bytes
    except Exception:
        cap = 128 * 1024 * 1024
    return int(min(96 * 1024 * 1024, cap * 3 // 4))


# --------------------------------------------------------------------------
# Kernel 1: per batch-fold — downsample conv (patch matmul), im2col of the
# statically-active taps + one big-K MXU pass per dilated branch, ReLU, and
# per-step BatchNorm partial statistics.  y is stored rate-interleaved bf16.
# --------------------------------------------------------------------------
def _branches_kernel(patches_ref, wd_ref, bd_ref, w1_ref, w2_ref, w3_ref, b_ref,
                     y_ref, psum_ref, psumsq_ref,            # outputs
                     pad_ref, col_ref,                       # scratch (bf16)
                     *, NB, Hd, Wd, CIN, COUT, taps_per_rate, rp):
    bf = jnp.bfloat16
    HW = Hd * Wd
    Hp = Hd + 2 * rp
    Wp = Wd + 2 * rp
    w_refs = (w1_ref, w2_ref, w3_ref)

    # Hoisted zero strips (broadcasts are not CSE'd if rebuilt per iteration).
    z_row = jnp.zeros((rp, Wp, CIN), bf) if rp > 0 else None
    z_col = jnp.zeros((Hd, rp, CIN), bf) if rp > 0 else None

    # ---- 2x2 / stride-2 downsample conv as one small matmul per folded image,
    # written as a bf16 zero-padded plane.  Halo refresh is data-independent
    # (required per step: scratch is per-core under megacore "parallel"), and
    # the halo is sized by the surviving taps, not max(rates).
    def fill_plane(nb):
        m0 = _mo(nb * HW, HW)        # first output row of this image
        r0 = _mo(nb * Hp, Hp)        # first padded-plane row of this image
        ds = jnp.dot(patches_ref[pl.ds(m0, HW), :], wd_ref[...],
                     preferred_element_type=jnp.float32) + bd_ref[...]
        if rp > 0:
            pad_ref[pl.ds(r0, rp), :, :] = z_row
            pad_ref[pl.ds(r0 + rp + Hd, rp), :, :] = z_row
            pad_ref[pl.ds(r0 + rp, Hd), 0:rp, :] = z_col
            pad_ref[pl.ds(r0 + rp, Hd), rp + Wd:Wp, :] = z_col
        pad_ref[pl.ds(r0 + rp, Hd), rp:rp + Wd, :] = (
            ds.astype(bf).reshape(Hd, Wd, CIN))

    _for_each_image(NB, fill_plane)

    # ---- per rate: im2col of active taps only, ONE (M, K)@(K, COUT) MXU pass,
    # bias + ReLU, BN partial sums, lane-sliced bf16 store into the
    # rate-interleaved y slab.
    for ri, taps in enumerate(taps_per_rate):
        # Tap 0 is always the un-shifted center; its col block is identical for
        # every rate, so only rate 0 copies it.
        copy_taps = tuple((t, dh, dw) for t, (dh, dw) in enumerate(taps)
                          if ri == 0 or (dh, dw) != (0, 0))

        if copy_taps:
            def build_cols(nb, _taps=copy_taps):
                m0 = _mo(nb * HW, HW)
                r0 = _mo(nb * Hp, Hp)
                for t, dh, dw in _taps:
                    win = pad_ref[pl.ds(r0 + rp + dh, Hd),
                                  rp + dw:rp + dw + Wd, :]
                    col_ref[pl.ds(m0, HW), t * CIN:(t + 1) * CIN] = (
                        win.reshape(HW, CIN))

            _for_each_image(NB, build_cols)

        K = len(taps) * CIN
        acc = jnp.dot(col_ref[:, 0:K], w_refs[ri][...],
                      preferred_element_type=jnp.float32)             # (M, COUT)
        y = jnp.maximum(acc + b_ref[ri:ri + 1, :], 0.0)                # f32

        # per-grid-step BatchNorm partial statistics (reduced in XLA glue)
        psum_ref[:, ri * COUT:(ri + 1) * COUT] = jnp.sum(y, axis=0, keepdims=True)
        psumsq_ref[:, ri * COUT:(ri + 1) * COUT] = jnp.sum(y * y, axis=0,
                                                           keepdims=True)
        y_ref[:, ri * COUT:(ri + 1) * COUT] = y.astype(bf)


# --------------------------------------------------------------------------
# Kernel 2: per batch-fold — 1x1 output conv with BatchNorm already folded into
# the weights/bias (glue): pure MXU matmul + bias.
# --------------------------------------------------------------------------
def _output_kernel(y_ref, wo_ref, bo_ref, o_ref):
    acc = jnp.dot(y_ref[...], wo_ref[...], preferred_element_type=jnp.float32)
    o_ref[...] = (acc + bo_ref[...]).astype(o_ref.dtype)


# --------------------------------------------------------------------------
# Wrapper
# --------------------------------------------------------------------------
def aspp_forward(x_nchw, params, *, target_m=1024, out_dtype=jnp.float32):
    N, CIN, H, W = x_nchw.shape
    Hd, Wd = H // 2, W // 2
    HW = Hd * Wd
    COUT = params["bo"].shape[0]
    bf = jnp.bfloat16

    taps_per_rate = tuple(_active_taps(r, Hd, Wd) for r in RATES)
    taps_dhdw = tuple(tuple((dh, dw) for _, _, dh, dw in t) for t in taps_per_rate)
    rp = max(max(abs(dh), abs(dw)) for t in taps_dhdw for dh, dw in t)
    Ks = tuple(len(t) * CIN for t in taps_per_rate)
    Kmax = max(Ks)

    NB = _pick_batch_fold(N, HW, target_m)   # fold batch into the matmul M dim
    G = N // NB
    M = NB * HW
    Hp, Wp = Hd + 2 * rp, Wd + 2 * rp

    # ----- glue: layout prep (NCHW->NHWC, 2x2 patch extraction, weight reshapes)
    x = jnp.transpose(x_nchw, (0, 2, 3, 1)).astype(bf)                # (N,H,W,CIN)
    patches = x.reshape(N, Hd, 2, Wd, 2, CIN)
    patches = jnp.transpose(patches, (0, 1, 3, 2, 4, 5)).reshape(G, M, 4 * CIN)

    wd = jnp.transpose(params["wd"], (2, 3, 1, 0)).reshape(4 * CIN, CIN).astype(bf)
    bd = params["bd"].reshape(1, CIN)                                  # f32
    w1 = _flatten_branch_weight(params["w1"], taps_per_rate[0]).astype(bf)
    w2 = _flatten_branch_weight(params["w2"], taps_per_rate[1]).astype(bf)
    w3 = _flatten_branch_weight(params["w3"], taps_per_rate[2]).astype(bf)
    b_all = jnp.stack([params["b1"], params["b2"], params["b3"]], axis=0)  # f32

    cparams = pltpu.CompilerParams(dimension_semantics=("parallel",),
                                   vmem_limit_bytes=_default_vmem_limit())

    kernel1 = functools.partial(_branches_kernel, NB=NB, Hd=Hd, Wd=Wd, CIN=CIN,
                                COUT=COUT, taps_per_rate=taps_dhdw, rp=rp)
    y_all, psum, psumsq = pl.pallas_call(
        kernel1,
        out_shape=(
            jax.ShapeDtypeStruct((G, M, 3 * COUT), bf),
            jax.ShapeDtypeStruct((G, 1, 3 * COUT), jnp.float32),
            jax.ShapeDtypeStruct((G, 1, 3 * COUT), jnp.float32),
        ),
        grid=(G,),
        in_specs=[
            pl.BlockSpec((None, M, 4 * CIN), lambda g: (g, 0, 0)),
            pl.BlockSpec((4 * CIN, CIN), lambda g: (0, 0)),
            pl.BlockSpec((1, CIN), lambda g: (0, 0)),
            pl.BlockSpec((Ks[0], COUT), lambda g: (0, 0)),
            pl.BlockSpec((Ks[1], COUT), lambda g: (0, 0)),
            pl.BlockSpec((Ks[2], COUT), lambda g: (0, 0)),
            pl.BlockSpec((3, COUT), lambda g: (0, 0)),
        ],
        out_specs=(
            pl.BlockSpec((None, M, 3 * COUT), lambda g: (g, 0, 0)),
            pl.BlockSpec((None, 1, 3 * COUT), lambda g: (g, 0, 0)),
            pl.BlockSpec((None, 1, 3 * COUT), lambda g: (g, 0, 0)),
        ),
        scratch_shapes=[pltpu.VMEM((NB * Hp, Wp, CIN), bf),
                        pltpu.VMEM((M, Kmax), bf)],
        compiler_params=cparams,
    )(patches, wd, bd, w1, w2, w3, b_all)

    # ----- glue: finish BatchNorm batch statistics (biased var, eps=1e-5) and
    # fold BN into the 1x1 output conv: wo' = invstd*wo, bo' = bo - (m*inv)@wo.
    count = float(N * HW)
    sums = jnp.sum(psum, axis=(0, 1))                                  # (3*COUT,)
    sumsqs = jnp.sum(psumsq, axis=(0, 1))
    mean = sums / count
    # TODO(synk): mean-of-squares variance can cancel catastrophically for very
    # large activations; switch to a two-pass/Welford reduction if that bites.
    var = jnp.maximum(sumsqs / count - mean * mean, 0.0)
    invstd = lax.rsqrt(var + BN_EPS)

    wo_t = jnp.transpose(params["wo"][:, :, 0, 0], (1, 0))             # (3C, C) f32
    wo_fold = (wo_t * invstd[:, None]).astype(bf)
    bo_fold = (params["bo"] - (mean * invstd) @ wo_t).reshape(1, COUT)  # f32

    out = pl.pallas_call(
        _output_kernel,
        out_shape=jax.ShapeDtypeStruct((G, M, COUT), out_dtype),
        grid=(G,),
        in_specs=[
            pl.BlockSpec((None, M, 3 * COUT), lambda g: (g, 0, 0)),
            pl.BlockSpec((3 * COUT, COUT), lambda g: (0, 0)),
            pl.BlockSpec((1, COUT), lambda g: (0, 0)),
        ],
        out_specs=pl.BlockSpec((None, M, COUT), lambda g: (g, 0, 0)),
        compiler_params=cparams,
    )(y_all, wo_fold, bo_fold)

    out = out.reshape(N, Hd, Wd, COUT)
    return jnp.transpose(out, (0, 3, 1, 2))                            # NCHW


# --------------------------------------------------------------------------
# Pure-JAX reference (NCHW, lax convs).  Mirrors the kernel's precision policy
# (bf16 conv operands, bf16 stored activations, BN folded into bf16 1x1
# weights, f32 accumulation & BN math) so the comparison isolates
# kernel/indexing/BatchNorm correctness.
# --------------------------------------------------------------------------
def aspp_reference(x, params):
    dn = ("NCHW", "OIHW", "NCHW")
    bf = jnp.bfloat16

    ds = lax.conv_general_dilated(x.astype(bf), params["wd"].astype(bf), (2, 2),
                                  "VALID", dimension_numbers=dn,
                                  preferred_element_type=jnp.float32)
    ds = ds + params["bd"][None, :, None, None]
    ds_bf = ds.astype(bf)

    ys, means, invstds = [], [], []
    for i, rate in enumerate(RATES, start=1):
        y = lax.conv_general_dilated(ds_bf, params[f"w{i}"].astype(bf), (1, 1),
                                     [(rate, rate), (rate, rate)],
                                     rhs_dilation=(rate, rate),
                                     dimension_numbers=dn,
                                     preferred_element_type=jnp.float32)
        y = jnp.maximum(y + params[f"b{i}"][None, :, None, None], 0.0)
        mean = y.mean(axis=(0, 2, 3))
        var = jnp.maximum((y * y).mean(axis=(0, 2, 3)) - mean * mean, 0.0)
        ys.append(y.astype(bf))
        means.append(mean)
        invstds.append(lax.rsqrt(var + BN_EPS))

    mean = jnp.concatenate(means)
    invstd = jnp.concatenate(invstds)
    wo_t = params["wo"][:, :, 0, 0].T                                  # (3C, C)
    wo_fold = (wo_t * invstd[:, None]).astype(bf)
    bo_fold = params["bo"] - (mean * invstd) @ wo_t

    cat = jnp.concatenate(ys, axis=1)                                  # bf16
    wo4 = jnp.transpose(wo_fold, (1, 0))[:, :, None, None]             # (C,3C,1,1)
    out = lax.conv_general_dilated(cat, wo4, (1, 1), "VALID",
                                   dimension_numbers=dn,
                                   preferred_element_type=jnp.float32)
    return out + bo_fold[None, :, None, None]


if __name__ == "__main__":
    key = jax.random.PRNGKey(0)
    N, CIN, H, W = 2, 4, 16, 16
    COUT = 8
    ks = jax.random.split(key, 12)

    def kaiming(k, shape):  # kaiming_normal_ (fan_in, gain sqrt(2)), deterministic
        fan_in = int(np.prod(shape[1:]))
        return jax.random.normal(k, shape, jnp.float32) * np.sqrt(2.0 / fan_in)

    def bias_init(k, shape, fan_in):  # torch conv default bias init
        bound = 1.0 / np.sqrt(fan_in)
        return jax.random.uniform(k, shape, jnp.float32, -bound, bound)

    params = {
        "wd": kaiming(ks[0], (CIN, CIN, 2, 2)),
        "bd": bias_init(ks[1], (CIN,), CIN * 4),
        "w1": kaiming(ks[2], (COUT, CIN, 3, 3)),
        "b1": bias_init(ks[3], (COUT,), CIN * 9),
        "w2": kaiming(ks[4], (COUT, CIN, 3, 3)),
        "b2": bias_init(ks[5], (COUT,), CIN * 9),
        "w3": kaiming(ks[6], (COUT, CIN, 3, 3)),
        "b3": bias_init(ks[7], (COUT,), CIN * 9),
        "wo": kaiming(ks[8], (COUT, 3 * COUT, 1, 1)),
        "bo": bias_init(ks[9], (COUT,), 3 * COUT),
    }
    x = jax.random.normal(ks[10], (N, CIN, H, W), jnp.float32)

    out = jax.block_until_ready(aspp_forward(x, params))
    ref = jax.block_until_ready(aspp_reference(x, params))
    assert out.shape == (N, COUT, H // 2, W // 2), out.shape
    np.testing.assert_allclose(np.asarray(out), np.asarray(ref), rtol=2e-3, atol=2e-3)
    print("KERNEL_OK")
</pallas_src>

<mosaic_0001>
module attributes {stable_mosaic.version = 11 : i64} {
  func.func @_branches_kernel(%arg0: i32, %arg1: memref<1x64x16xbf16, #tpu.memory_space<vmem>>, %arg2: memref<16x4xbf16, #tpu.memory_space<vmem>>, %arg3: memref<1x4xf32, #tpu.memory_space<vmem>>, %arg4: memref<36x8xbf16, #tpu.memory_space<vmem>>, %arg5: memref<4x8xbf16, #tpu.memory_space<vmem>>, %arg6: memref<4x8xbf16, #tpu.memory_space<vmem>>, %arg7: memref<3x8xf32, #tpu.memory_space<vmem>>, %arg8: memref<1x64x24xbf16, #tpu.memory_space<vmem>>, %arg9: memref<1x1x24xf32, #tpu.memory_space<vmem>>, %arg10: memref<1x1x24xf32, #tpu.memory_space<vmem>>, %arg11: memref<20x20x4xbf16, #tpu.memory_space<vmem>>, %arg12: memref<64x36xbf16, #tpu.memory_space<vmem>>) attributes {dimension_semantics = [#tpu.dimension_semantics<parallel>], iteration_bounds = array<i64: 2>, scalar_prefetch = 0 : i64, scratch_operands = 2 : i64, tpu.core_type = #tpu.core_type<tc>, window_params = [{transform_indices = @transform_0, window_bounds = array<i64: 1, 64, 16>}, {pipeline_mode = #tpu.pipeline_mode<synchronous>, transform_indices = @transform_1, window_bounds = array<i64: 16, 4>}, {pipeline_mode = #tpu.pipeline_mode<synchronous>, transform_indices = @transform_2, window_bounds = array<i64: 1, 4>}, {pipeline_mode = #tpu.pipeline_mode<synchronous>, transform_indices = @transform_3, window_bounds = array<i64: 36, 8>}, {pipeline_mode = #tpu.pipeline_mode<synchronous>, transform_indices = @transform_4, window_bounds = array<i64: 4, 8>}, {pipeline_mode = #tpu.pipeline_mode<synchronous>, transform_indices = @transform_5, window_bounds = array<i64: 4, 8>}, {pipeline_mode = #tpu.pipeline_mode<synchronous>, transform_indices = @transform_6, window_bounds = array<i64: 3, 8>}, {transform_indices = @transform_7, window_bounds = array<i64: 1, 64, 24>}, {transform_indices = @transform_8, window_bounds = array<i64: 1, 1, 24>}, {transform_indices = @transform_9, window_bounds = array<i64: 1, 1, 24>}]} {
    %cst = arith.constant 0.000000e+00 : bf16
    %0 = vector.broadcast %cst : bf16 to vector<6x20x4xbf16>
    %cst_0 = arith.constant 0.000000e+00 : bf16
    %1 = vector.broadcast %cst_0 : bf16 to vector<8x6x4xbf16>
    %c0 = arith.constant 0 : index
    %c0_1 = arith.constant 0 : index
    %c0_2 = arith.constant 0 : index
    %2 = vector.load %arg1[%c0, %c0_1, %c0_2] : memref<1x64x16xbf16, #tpu.memory_space<vmem>>, vector<1x64x16xbf16>
    %3 = vector.shape_cast %2 : vector<1x64x16xbf16> to vector<64x16xbf16>
    %c0_3 = arith.constant 0 : index
    %c0_4 = arith.constant 0 : index
    %4 = vector.load %arg2[%c0_3, %c0_4] : memref<16x4xbf16, #tpu.memory_space<vmem>>, vector<16x4xbf16>
    %cst_5 = arith.constant dense<0.000000e+00> : vector<64x4xf32>
    %5 = tpu.matmul %3, %4, %cst_5 {dimension_numbers = #tpu.dot_dimension_numbers<[1], [0], [0], [1], [0, 0, 1, 1], [], []>} : vector<64x16xbf16>, vector<16x4xbf16>, vector<64x4xf32> -> vector<64x4xf32>
    %c0_6 = arith.constant 0 : index
    %c0_7 = arith.constant 0 : index
    %6 = vector.load %arg3[%c0_6, %c0_7] : memref<1x4xf32, #tpu.memory_space<vmem>>, vector<1x4xf32>
    %7 = vector.broadcast %6 : vector<1x4xf32> to vector<64x4xf32>
    %8 = arith.addf %5, %7 : vector<64x4xf32>
    %c0_8 = arith.constant 0 : index
    %c0_9 = arith.constant 0 : index
    %c0_10 = arith.constant 0 : index
    %9 = vector.load %arg11[%c0_8, %c0_9, %c0_10] : memref<20x20x4xbf16, #tpu.memory_space<vmem>>, vector<6x20x4xbf16>
    tpu.vector_store %arg11[%c0_8, %c0_9, %c0_10], %0 {strides = array<i32>} : memref<20x20x4xbf16, #tpu.memory_space<vmem>>, vector<6x20x4xbf16>,
    %c14 = arith.constant 14 : index
    %c0_11 = arith.constant 0 : index
    %c0_12 = arith.constant 0 : index
    %10 = vector.load %arg11[%c14, %c0_11, %c0_12] : memref<20x20x4xbf16, #tpu.memory_space<vmem>>, vector<6x20x4xbf16>
    tpu.vector_store %arg11[%c14, %c0_11, %c0_12], %0 {strides = array<i32>} : memref<20x20x4xbf16, #tpu.memory_space<vmem>>, vector<6x20x4xbf16>,
    %c6 = arith.constant 6 : index
    %c0_13 = arith.constant 0 : index
    %c0_14 = arith.constant 0 : index
    %11 = vector.load %arg11[%c6, %c0_13, %c0_14] : memref<20x20x4xbf16, #tpu.memory_space<vmem>>, vector<8x6x4xbf16>
    tpu.vector_store %arg11[%c6, %c0_13, %c0_14], %1 {strides = array<i32>} : memref<20x20x4xbf16, #tpu.memory_space<vmem>>, vector<8x6x4xbf16>,
    %c6_15 = arith.constant 6 : index
    %c14_16 = arith.constant 14 : index
    %c0_17 = arith.constant 0 : index
    %12 = vector.load %arg11[%c6_15, %c14_16, %c0_17] : memref<20x20x4xbf16, #tpu.memory_space<vmem>>, vector<8x6x4xbf16>
    tpu.vector_store %arg11[%c6_15, %c14_16, %c0_17], %1 {strides = array<i32>} : memref<20x20x4xbf16, #tpu.memory_space<vmem>>, vector<8x6x4xbf16>,
    %13 = arith.truncf %8 : vector<64x4xf32> to vector<64x4xbf16>
    %14 = vector.shape_cast %13 : vector<64x4xbf16> to vector<8x8x4xbf16>
    %c6_18 = arith.constant 6 : index
    %c6_19 = arith.constant 6 : index
    %c0_20 = arith.constant 0 : index
    %15 = vector.load %arg11[%c6_18, %c6_19, %c0_20] : memref<20x20x4xbf16, #tpu.memory_space<vmem>>, vector<8x8x4xbf16>
    tpu.vector_store %arg11[%c6_18, %c6_19, %c0_20], %14 {strides = array<i32>} : memref<20x20x4xbf16, #tpu.memory_space<vmem>>, vector<8x8x4xbf16>,
    %c6_21 = arith.constant 6 : index
    %c6_22 = arith.constant 6 : index
    %c0_23 = arith.constant 0 : index
    %16 = vector.load %arg11[%c6_21, %c6_22, %c0_23] : memref<20x20x4xbf16, #tpu.memory_space<vmem>>, vector<8x8x4xbf16>
    %17 = vector.shape_cast %16 : vector<8x8x4xbf16> to vector<64x4xbf16>
    %c0_24 = arith.constant 0 : index
    %c0_25 = arith.constant 0 : index
    %18 = vector.load %arg12[%c0_24, %c0_25] : memref<64x36xbf16, #tpu.memory_space<vmem>>, vector<64x4xbf16>
    tpu.vector_store %arg12[%c0_24, %c0_25], %17 {strides = array<i32>} : memref<64x36xbf16, #tpu.memory_space<vmem>>, vector<64x4xbf16>,
    %c0_26 = arith.constant 0 : index
    %c0_27 = arith.constant 0 : index
    %c0_28 = arith.constant 0 : index
    %19 = vector.load %arg11[%c0_26, %c0_27, %c0_28] : memref<20x20x4xbf16, #tpu.memory_space<vmem>>, vector<8x8x4xbf16>
    %20 = vector.shape_cast %19 : vector<8x8x4xbf16> to vector<64x4xbf16>
    %c0_29 = arith.constant 0 : index
    %c4 = arith.constant 4 : index
    %21 = vector.load %arg12[%c0_29, %c4] : memref<64x36xbf16, #tpu.memory_space<vmem>>, vector<64x4xbf16>
    tpu.vector_store %arg12[%c0_29, %c4], %20 {strides = array<i32>} : memref<64x36xbf16, #tpu.memory_space<vmem>>, vector<64x4xbf16>,
    %c0_30 = arith.constant 0 : index
    %c6_31 = arith.constant 6 : index
    %c0_32 = arith.constant 0 : index
    %22 = vector.load %arg11[%c0_30, %c6_31, %c0_32] : memref<20x20x4xbf16, #tpu.memory_space<vmem>>, vector<8x8x4xbf16>
    %23 = vector.shape_cast %22 : vector<8x8x4xbf16> to vector<64x4xbf16>
    %c0_33 = arith.constant 0 : index
    %c8 = arith.constant 8 : index
    %24 = vector.load %arg12[%c0_33, %c8] : memref<64x36xbf16, #tpu.memory_space<vmem>>, vector<64x4xbf16>
    tpu.vector_store %arg12[%c0_33, %c8], %23 {strides = array<i32>} : memref<64x36xbf16, #tpu.memory_space<vmem>>, vector<64x4xbf16>,
    %c0_34 = arith.constant 0 : index
    %c12 = arith.constant 12 : index
    %c0_35 = arith.constant 0 : index
    %25 = vector.load %arg11[%c0_34, %c12, %c0_35] : memref<20x20x4xbf16, #tpu.memory_space<vmem>>, vector<8x8x4xbf16>
    %26 = vector.shape_cast %25 : vector<8x8x4xbf16> to vector<64x4xbf16>
    %c0_36 = arith.constant 0 : index
    %c12_37 = arith.constant 12 : index
    %27 = vector.load %arg12[%c0_36, %c12_37] : memref<64x36xbf16, #tpu.memory_space<vmem>>, vector<64x4xbf16>
    tpu.vector_store %arg12[%c0_36, %c12_37], %26 {strides = array<i32>} : memref<64x36xbf16, #tpu.memory_space<vmem>>, vector<64x4xbf16>,
    %c6_38 = arith.constant 6 : index
    %c0_39 = arith.constant 0 : index
    %c0_40 = arith.constant 0 : index
    %28 = vector.load %arg11[%c6_38, %c0_39, %c0_40] : memref<20x20x4xbf16, #tpu.memory_space<vmem>>, vector<8x8x4xbf16>
    %29 = vector.shape_cast %28 : vector<8x8x4xbf16> to vector<64x4xbf16>
    %c0_41 = arith.constant 0 : index
    %c16 = arith.constant 16 : index
    %30 = vector.load %arg12[%c0_41, %c16] : memref<64x36xbf16, #tpu.memory_space<vmem>>, vector<64x4xbf16>
    tpu.vector_store %arg12[%c0_41, %c16], %29 {strides = array<i32>} : memref<64x36xbf16, #tpu.memory_space<vmem>>, vector<64x4xbf16>,
    %c6_42 = arith.constant 6 : index
    %c12_43 = arith.constant 12 : index
    %c0_44 = arith.constant 0 : index
    %31 = vector.load %arg11[%c6_42, %c12_43, %c0_44] : memref<20x20x4xbf16, #tpu.memory_space<vmem>>, vector<8x8x4xbf16>
    %32 = vector.shape_cast %31 : vector<8x8x4xbf16> to vector<64x4xbf16>
    %c0_45 = arith.constant 0 : index
    %c20 = arith.constant 20 : index
    %33 = vector.load %arg12[%c0_45, %c20] : memref<64x36xbf16, #tpu.memory_space<vmem>>, vector<64x4xbf16>
    tpu.vector_store %arg12[%c0_45, %c20], %32 {strides = array<i32>} : memref<64x36xbf16, #tpu.memory_space<vmem>>, vector<64x4xbf16>,
    %c12_46 = arith.constant 12 : index
    %c0_47 = arith.constant 0 : index
    %c0_48 = arith.constant 0 : index
    %34 = vector.load %arg11[%c12_46, %c0_47, %c0_48] : memref<20x20x4xbf16, #tpu.memory_space<vmem>>, vector<8x8x4xbf16>
    %35 = vector.shape_cast %34 : vector<8x8x4xbf16> to vector<64x4xbf16>
    %c0_49 = arith.constant 0 : index
    %c24 = arith.constant 24 : index
    %36 = vector.load %arg12[%c0_49, %c24] : memref<64x36xbf16, #tpu.memory_space<vmem>>, vector<64x4xbf16>
    tpu.vector_store %arg12[%c0_49, %c24], %35 {strides = array<i32>} : memref<64x36xbf16, #tpu.memory_space<vmem>>, vector<64x4xbf16>,
    %c12_50 = arith.constant 12 : index
    %c6_51 = arith.constant 6 : index
    %c0_52 = arith.constant 0 : index
    %37 = vector.load %arg11[%c12_50, %c6_51, %c0_52] : memref<20x20x4xbf16, #tpu.memory_space<vmem>>, vector<8x8x4xbf16>
    %38 = vector.shape_cast %37 : vector<8x8x4xbf16> to vector<64x4xbf16>
    %c0_53 = arith.constant 0 : index
    %c28 = arith.constant 28 : index
    %39 = vector.load %arg12[%c0_53, %c28] : memref<64x36xbf16, #tpu.memory_space<vmem>>, vector<64x4xbf16>
    tpu.vector_store %arg12[%c0_53, %c28], %38 {strides = array<i32>} : memref<64x36xbf16, #tpu.memory_space<vmem>>, vector<64x4xbf16>,
    %c12_54 = arith.constant 12 : index
    %c12_55 = arith.constant 12 : index
    %c0_56 = arith.constant 0 : index
    %40 = vector.load %arg11[%c12_54, %c12_55, %c0_56] : memref<20x20x4xbf16, #tpu.memory_space<vmem>>, vector<8x8x4xbf16>
    %41 = vector.shape_cast %40 : vector<8x8x4xbf16> to vector<64x4xbf16>
    %c0_57 = arith.constant 0 : index
    %c32 = arith.constant 32 : index
    %42 = vector.load %arg12[%c0_57, %c32] : memref<64x36xbf16, #tpu.memory_space<vmem>>, vector<64x4xbf16>
    tpu.vector_store %arg12[%c0_57, %c32], %41 {strides = array<i32>} : memref<64x36xbf16, #tpu.memory_space<vmem>>, vector<64x4xbf16>,
    %c0_58 = arith.constant 0 : index
    %c0_59 = arith.constant 0 : index
    %43 = vector.load %arg12[%c0_58, %c0_59] : memref<64x36xbf16, #tpu.memory_space<vmem>>, vector<64x36xbf16>
    %c0_60 = arith.constant 0 : index
    %c0_61 = arith.constant 0 : index
    %44 = vector.load %arg4[%c0_60, %c0_61] : memref<36x8xbf16, #tpu.memory_space<vmem>>, vector<36x8xbf16>
    %cst_62 = arith.constant dense<0.000000e+00> : vector<64x8xf32>
    %45 = tpu.matmul %43, %44, %cst_62 {dimension_numbers = #tpu.dot_dimension_numbers<[1], [0], [0], [1], [0, 0, 1, 1], [], []>} : vector<64x36xbf16>, vector<36x8xbf16>, vector<64x8xf32> -> vector<64x8xf32>
    %c0_63 = arith.constant 0 : index
    %c0_64 = arith.constant 0 : index
    %46 = vector.load %arg7[%c0_63, %c0_64] : memref<3x8xf32, #tpu.memory_space<vmem>>, vector<1x8xf32>
    %47 = vector.broadcast %46 : vector<1x8xf32> to vector<64x8xf32>
    %48 = arith.addf %45, %47 : vector<64x8xf32>
    %cst_65 = arith.constant 0.000000e+00 : f32
    %49 = vector.broadcast %cst_65 : f32 to vector<64x8xf32>
    %50 = arith.maximumf %48, %49 : vector<64x8xf32>
    %cst_66 = arith.constant dense<0.000000e+00> : vector<8xf32>
    %51 = vector.multi_reduction <add>, %50, %cst_66 [0] : vector<64x8xf32> to vector<8xf32>
    %52 = vector.shape_cast %51 : vector<8xf32> to vector<1x8xf32>
    %c0_67 = arith.constant 0 : index
    %c0_68 = arith.constant 0 : index
    %c0_69 = arith.constant 0 : index
    %53 = vector.load %arg9[%c0_67, %c0_68, %c0_69] : memref<1x1x24xf32, #tpu.memory_space<vmem>>, vector<1x1x8xf32>
    %54 = vector.shape_cast %53 : vector<1x1x8xf32> to vector<1x8xf32>
    %55 = vector.shape_cast %52 : vector<1x8xf32> to vector<1x1x8xf32>
    tpu.vector_store %arg9[%c0_67, %c0_68, %c0_69], %55 {strides = array<i32>} : memref<1x1x24xf32, #tpu.memory_space<vmem>>, vector<1x1x8xf32>,
    %56 = arith.mulf %50, %50 : vector<64x8xf32>
    %cst_70 = arith.constant dense<0.000000e+00> : vector<8xf32>
    %57 = vector.multi_reduction <add>, %56, %cst_70 [0] : vector<64x8xf32> to vector<8xf32>
    %58 = vector.shape_cast %57 : vector<8xf32> to vector<1x8xf32>
    %c0_71 = arith.constant 0 : index
    %c0_72 = arith.constant 0 : index
    %c0_73 = arith.constant 0 : index
    %59 = vector.load %arg10[%c0_71, %c0_72, %c0_73] : memref<1x1x24xf32, #tpu.memory_space<vmem>>, vector<1x1x8xf32>
    %60 = vector.shape_cast %59 : vector<1x1x8xf32> to vector<1x8xf32>
    %61 = vector.shape_cast %58 : vector<1x8xf32> to vector<1x1x8xf32>
    tpu.vector_store %arg10[%c0_71, %c0_72, %c0_73], %61 {strides = array<i32>} : memref<1x1x24xf32, #tpu.memory_space<vmem>>, vector<1x1x8xf32>,
    %62 = arith.truncf %50 : vector<64x8xf32> to vector<64x8xbf16>
    %c0_74 = arith.constant 0 : index
    %c0_75 = arith.constant 0 : index
    %c0_76 = arith.constant 0 : index
    %63 = vector.load %arg8[%c0_74, %c0_75, %c0_76] : memref<1x64x24xbf16, #tpu.memory_space<vmem>>, vector<1x64x8xbf16>
    %64 = vector.shape_cast %63 : vector<1x64x8xbf16> to vector<64x8xbf16>
    %65 = vector.shape_cast %62 : vector<64x8xbf16> to vector<1x64x8xbf16>
    tpu.vector_store %arg8[%c0_74, %c0_75, %c0_76], %65 {strides = array<i32>} : memref<1x64x24xbf16, #tpu.memory_space<vmem>>, vector<1x64x8xbf16>,
    %c0_77 = arith.constant 0 : index
    %c0_78 = arith.constant 0 : index
    %66 = vector.load %arg12[%c0_77, %c0_78] : memref<64x36xbf16, #tpu.memory_space<vmem>>, vector<64x4xbf16>
    %c0_79 = arith.constant 0 : index
    %c0_80 = arith.constant 0 : index
    %67 = vector.load %arg5[%c0_79, %c0_80] : memref<4x8xbf16, #tpu.memory_space<vmem>>, vector<4x8xbf16>
    %cst_81 = arith.constant dense<0.000000e+00> : vector<64x8xf32>
    %68 = tpu.matmul %66, %67, %cst_81 {dimension_numbers = #tpu.dot_dimension_numbers<[1], [0], [0], [1], [0, 0, 1, 1], [], []>} : vector<64x4xbf16>, vector<4x8xbf16>, vector<64x8xf32> -> vector<64x8xf32>
    %c1 = arith.constant 1 : index
    %c0_82 = arith.constant 0 : index
    %69 = vector.load %arg7[%c1, %c0_82] : memref<3x8xf32, #tpu.memory_space<vmem>>, vector<1x8xf32>
    %70 = vector.broadcast %69 : vector<1x8xf32> to vector<64x8xf32>
    %71 = arith.addf %68, %70 : vector<64x8xf32>
    %cst_83 = arith.constant 0.000000e+00 : f32
    %72 = vector.broadcast %cst_83 : f32 to vector<64x8xf32>
    %73 = arith.maximumf %71, %72 : vector<64x8xf32>
    %cst_84 = arith.constant dense<0.000000e+00> : vector<8xf32>
    %74 = vector.multi_reduction <add>, %73, %cst_84 [0] : vector<64x8xf32> to vector<8xf32>
    %75 = vector.shape_cast %74 : vector<8xf32> to vector<1x8xf32>
    %c0_85 = arith.constant 0 : index
    %c0_86 = arith.constant 0 : index
    %c8_87 = arith.constant 8 : index
    %76 = vector.load %arg9[%c0_85, %c0_86, %c8_87] : memref<1x1x24xf32, #tpu.memory_space<vmem>>, vector<1x1x8xf32>
    %77 = vector.shape_cast %76 : vector<1x1x8xf32> to vector<1x8xf32>
    %78 = vector.shape_cast %75 : vector<1x8xf32> to vector<1x1x8xf32>
    tpu.vector_store %arg9[%c0_85, %c0_86, %c8_87], %78 {strides = array<i32>} : memref<1x1x24xf32, #tpu.memory_space<vmem>>, vector<1x1x8xf32>,
    %79 = arith.mulf %73, %73 : vector<64x8xf32>
    %cst_88 = arith.constant dense<0.000000e+00> : vector<8xf32>
    %80 = vector.multi_reduction <add>, %79, %cst_88 [0] : vector<64x8xf32> to vector<8xf32>
    %81 = vector.shape_cast %80 : vector<8xf32> to vector<1x8xf32>
    %c0_89 = arith.constant 0 : index
    %c0_90 = arith.constant 0 : index
    %c8_91 = arith.constant 8 : index
    %82 = vector.load %arg10[%c0_89, %c0_90, %c8_91] : memref<1x1x24xf32, #tpu.memory_space<vmem>>, vector<1x1x8xf32>
    %83 = vector.shape_cast %82 : vector<1x1x8xf32> to vector<1x8xf32>
    %84 = vector.shape_cast %81 : vector<1x8xf32> to vector<1x1x8xf32>
    tpu.vector_store %arg10[%c0_89, %c0_90, %c8_91], %84 {strides = array<i32>} : memref<1x1x24xf32, #tpu.memory_space<vmem>>, vector<1x1x8xf32>,
    %85 = arith.truncf %73 : vector<64x8xf32> to vector<64x8xbf16>
    %c0_92 = arith.constant 0 : index
    %c0_93 = arith.constant 0 : index
    %c8_94 = arith.constant 8 : index
    %86 = vector.load %arg8[%c0_92, %c0_93, %c8_94] : memref<1x64x24xbf16, #tpu.memory_space<vmem>>, vector<1x64x8xbf16>
    %87 = vector.shape_cast %86 : vector<1x64x8xbf16> to vector<64x8xbf16>
    %88 = vector.shape_cast %85 : vector<64x8xbf16> to vector<1x64x8xbf16>
    tpu.vector_store %arg8[%c0_92, %c0_93, %c8_94], %88 {strides = array<i32>} : memref<1x64x24xbf16, #tpu.memory_space<vmem>>, vector<1x64x8xbf16>,
    %c0_95 = arith.constant 0 : index
    %c0_96 = arith.constant 0 : index
    %89 = vector.load %arg12[%c0_95, %c0_96] : memref<64x36xbf16, #tpu.memory_space<vmem>>, vector<64x4xbf16>
    %c0_97 = arith.constant 0 : index
    %c0_98 = arith.constant 0 : index
    %90 = vector.load %arg6[%c0_97, %c0_98] : memref<4x8xbf16, #tpu.memory_space<vmem>>, vector<4x8xbf16>
    %cst_99 = arith.constant dense<0.000000e+00> : vector<64x8xf32>
    %91 = tpu.matmul %89, %90, %cst_99 {dimension_numbers = #tpu.dot_dimension_numbers<[1], [0], [0], [1], [0, 0, 1, 1], [], []>} : vector<64x4xbf16>, vector<4x8xbf16>, vector<64x8xf32> -> vector<64x8xf32>
    %c2 = arith.constant 2 : index
    %c0_100 = arith.constant 0 : index
    %92 = vector.load %arg7[%c2, %c0_100] : memref<3x8xf32, #tpu.memory_space<vmem>>, vector<1x8xf32>
    %93 = vector.broadcast %92 : vector<1x8xf32> to vector<64x8xf32>
    %94 = arith.addf %91, %93 : vector<64x8xf32>
    %cst_101 = arith.constant 0.000000e+00 : f32
    %95 = vector.broadcast %cst_101 : f32 to vector<64x8xf32>
    %96 = arith.maximumf %94, %95 : vector<64x8xf32>
    %cst_102 = arith.constant dense<0.000000e+00> : vector<8xf32>
    %97 = vector.multi_reduction <add>, %96, %cst_102 [0] : vector<64x8xf32> to vector<8xf32>
    %98 = vector.shape_cast %97 : vector<8xf32> to vector<1x8xf32>
    %c0_103 = arith.constant 0 : index
    %c0_104 = arith.constant 0 : index
    %c16_105 = arith.constant 16 : index
    %99 = vector.load %arg9[%c0_103, %c0_104, %c16_105] : memref<1x1x24xf32, #tpu.memory_space<vmem>>, vector<1x1x8xf32>
    %100 = vector.shape_cast %99 : vector<1x1x8xf32> to vector<1x8xf32>
    %101 = vector.shape_cast %98 : vector<1x8xf32> to vector<1x1x8xf32>
    tpu.vector_store %arg9[%c0_103, %c0_104, %c16_105], %101 {strides = array<i32>} : memref<1x1x24xf32, #tpu.memory_space<vmem>>, vector<1x1x8xf32>,
    %102 = arith.mulf %96, %96 : vector<64x8xf32>
    %cst_106 = arith.constant dense<0.000000e+00> : vector<8xf32>
    %103 = vector.multi_reduction <add>, %102, %cst_106 [0] : vector<64x8xf32> to vector<8xf32>
    %104 = vector.shape_cast %103 : vector<8xf32> to vector<1x8xf32>
    %c0_107 = arith.constant 0 : index
    %c0_108 = arith.constant 0 : index
    %c16_109 = arith.constant 16 : index
    %105 = vector.load %arg10[%c0_107, %c0_108, %c16_109] : memref<1x1x24xf32, #tpu.memory_space<vmem>>, vector<1x1x8xf32>
    %106 = vector.shape_cast %105 : vector<1x1x8xf32> to vector<1x8xf32>
    %107 = vector.shape_cast %104 : vector<1x8xf32> to vector<1x1x8xf32>
    tpu.vector_store %arg10[%c0_107, %c0_108, %c16_109], %107 {strides = array<i32>} : memref<1x1x24xf32, #tpu.memory_space<vmem>>, vector<1x1x8xf32>,
    %108 = arith.truncf %96 : vector<64x8xf32> to vector<64x8xbf16>
    %c0_110 = arith.constant 0 : index
    %c0_111 = arith.constant 0 : index
    %c16_112 = arith.constant 16 : index
    %109 = vector.load %arg8[%c0_110, %c0_111, %c16_112] : memref<1x64x24xbf16, #tpu.memory_space<vmem>>, vector<1x64x8xbf16>
    %110 = vector.shape_cast %109 : vector<1x64x8xbf16> to vector<64x8xbf16>
    %111 = vector.shape_cast %108 : vector<64x8xbf16> to vector<1x64x8xbf16>
    tpu.vector_store %arg8[%c0_110, %c0_111, %c16_112], %111 {strides = array<i32>} : memref<1x64x24xbf16, #tpu.memory_space<vmem>>, vector<1x64x8xbf16>,
    return
  }
  func.func @transform_0(%arg0: i32) -> (i32, i32, i32) {
    %c0_i32 = arith.constant 0 : i32
    %c0_i32_0 = arith.constant 0 : i32
    %c0_i32_1 = arith.constant 0 : i32
    return %arg0, %c0_i32, %c0_i32_0 : i32, i32, i32
  }
  func.func @transform_1(%arg0: i32) -> (i32, i32) {
    %c0_i32 = arith.constant 0 : i32
    %c0_i32_0 = arith.constant 0 : i32
    %c0_i32_1 = arith.constant 0 : i32
    return %c0_i32, %c0_i32_0 : i32, i32
  }
  func.func @transform_2(%arg0: i32) -> (i32, i32) {
    %c0_i32 = arith.constant 0 : i32
    %c0_i32_0 = arith.constant 0 : i32
    %c0_i32_1 = arith.constant 0 : i32
    return %c0_i32, %c0_i32_0 : i32, i32
  }
  func.func @transform_3(%arg0: i32) -> (i32, i32) {
    %c0_i32 = arith.constant 0 : i32
    %c0_i32_0 = arith.constant 0 : i32
    %c0_i32_1 = arith.constant 0 : i32
    return %c0_i32, %c0_i32_0 : i32, i32
  }
  func.func @transform_4(%arg0: i32) -> (i32, i32) {
    %c0_i32 = arith.constant 0 : i32
    %c0_i32_0 = arith.constant 0 : i32
    %c0_i32_1 = arith.constant 0 : i32
    return %c0_i32, %c0_i32_0 : i32, i32
  }
  func.func @transform_5(%arg0: i32) -> (i32, i32) {
    %c0_i32 = arith.constant 0 : i32
    %c0_i32_0 = arith.constant 0 : i32
    %c0_i32_1 = arith.constant 0 : i32
    return %c0_i32, %c0_i32_0 : i32, i32
  }
  func.func @transform_6(%arg0: i32) -> (i32, i32) {
    %c0_i32 = arith.constant 0 : i32
    %c0_i32_0 = arith.constant 0 : i32
    %c0_i32_1 = arith.constant 0 : i32
    return %c0_i32, %c0_i32_0 : i32, i32
  }
  func.func @transform_7(%arg0: i32) -> (i32, i32, i32) {
    %c0_i32 = arith.constant 0 : i32
    %c0_i32_0 = arith.constant 0 : i32
    %c0_i32_1 = arith.constant 0 : i32
    return %arg0, %c0_i32, %c0_i32_0 : i32, i32, i32
  }
  func.func @transform_8(%arg0: i32) -> (i32, i32, i32) {
    %c0_i32 = arith.constant 0 : i32
    %c0_i32_0 = arith.constant 0 : i32
    %c0_i32_1 = arith.constant 0 : i32
    return %arg0, %c0_i32, %c0_i32_0 : i32, i32, i32
  }
  func.func @transform_9(%arg0: i32) -> (i32, i32, i32) {
    %c0_i32 = arith.constant 0 : i32
    %c0_i32_0 = arith.constant 0 : i32
    %c0_i32_1 = arith.constant 0 : i32
    return %arg0, %c0_i32, %c0_i32_0 : i32, i32, i32
  }
}

</mosaic_0001>

<llo_original>
// kernel: tpu_custom_call.1
$region0: #{tpu_custom_call.1}
  #allocation0 [shape = 'u32[]', space=smem, size = 0x4, offset = 0x4, fixed_abs, tag = 'smem constant byte address 0x4 - core index']
  #allocation1 [shape = 'u32[144,128]{1,0:T(1,128)}', space=vmem, size = 0x12000, scoped, tag = 'internal scratch']
  #allocation2 [shape = 'bf16[20,20,4]{2,1,0:T(8,128)(2,1)}', space=vmem, size = 0x1e000, scoped, tag = 'scratch operand']
  #allocation3 [shape = 'bf16[64,36]{1,0:T(16,128)(2,1)}', space=vmem, size = 0x4000, scoped, tag = 'scratch operand']
  %s0 = inlined_call_operand.hbm [shape: bf16[2,64,16], index: 0, kind: input, shape index: {}]
  %s1 = inlined_call_operand.hbm [shape: bf16[16,4], index: 1, kind: input, shape index: {}]
  %s2 = inlined_call_operand.hbm [shape: f32[1,4], index: 2, kind: input, shape index: {}]
  %s3 = inlined_call_operand.hbm [shape: bf16[36,8], index: 3, kind: input, shape index: {}]
  %s4 = inlined_call_operand.hbm [shape: bf16[4,8], index: 4, kind: input, shape index: {}]
  %s5 = inlined_call_operand.hbm [shape: bf16[4,8], index: 5, kind: input, shape index: {}]
  %s6 = inlined_call_operand.hbm [shape: f32[3,8], index: 6, kind: input, shape index: {}]
  %s7 = inlined_call_operand.hbm [shape: bf16[2,64,24], index: 7, kind: output, shape index: {0}]
  %s8 = inlined_call_operand.hbm [shape: f32[2,1,24], index: 8, kind: output, shape index: {1}]
  %s9 = inlined_call_operand.hbm [shape: f32[2,1,24], index: 9, kind: output, shape index: {2}]
  %10 = xla_tuple %s7, %s8, %s9
  %s11 = sld [smem:[#allocation0]]
  $region105: #{tpu_custom_call.1} parent=0
    _
  %s13 = ssub.s32 1, %s11
  %s14 = scalar_select 0, %s13, %s11
  $region1: #{tpu_custom_call.1} parent=0
    #allocation4 [shape = 'u8[32768]{0}', space=vmem, size = 0x8000, scoped, tag = 'input window, operand 0']
    #allocation5 [shape = 's32[2]{0}', space=sflag, size = 0x8, scoped, tag = 'scoped memory for tpu_custom_call.1']
    #allocation6 [shape = 's32[2]{0}', space=sflag, size = 0x8, scoped, tag = 'scoped memory for tpu_custom_call.1']
    #allocation7 [shape = 'u8[4096]{0}', space=vmem, size = 0x1000, scoped, tag = 'input window, operand 1, single buffered']
    #allocation8 [shape = 's32[1]{0}', space=sflag, size = 0x4, scoped, tag = 'scoped memory for tpu_custom_call.1']
    #allocation9 [shape = 'u8[512]{0}', space=vmem, size = 0x400, scoped, tag = 'input window, operand 2, single buffered']
    #allocation10 [shape = 'u8[10240]{0}', space=vmem, size = 0x2800, scoped, tag = 'input window, operand 3, single buffered']
    #allocation11 [shape = 's32[1]{0}', space=sflag, size = 0x4, scoped, tag = 'scoped memory for tpu_custom_call.1']
    #allocation12 [shape = 'u8[1024]{0}', space=vmem, size = 0x400, scoped, tag = 'input window, operand 4, single buffered']
    #allocation13 [shape = 'u8[1024]{0}', space=vmem, size = 0x400, scoped, tag = 'input window, operand 5, single buffered']
    #allocation14 [shape = 's32[1]{0}', space=sflag, size = 0x4, scoped, tag = 'scoped memory for tpu_custom_call.1']
    #allocation15 [shape = 'u8[2048]{0}', space=vmem, size = 0x800, scoped, tag = 'input window, operand 6, single buffered']
    #allocation16 [shape = 'u8[32768]{0}', space=vmem, size = 0x8000, scoped, tag = 'output window, operand 0']
    #allocation17 [shape = 'u8[1024]{0}', space=vmem, size = 0x400, scoped, tag = 'output window, operand 1']
    #allocation18 [shape = 's32[2]{0}', space=sflag, size = 0x8, scoped, tag = 'scoped memory for tpu_custom_call.1']
    #allocation19 [shape = 'u8[1024]{0}', space=vmem, size = 0x400, scoped, tag = 'output window, operand 2']
    %15 = vsyncpa [#allocation5], 0
    %s16 = scalar_lea.sflag [#allocation5], 1
    %17 = vsyncpa %s16, 0
    %18 = vsyncpa [#allocation8], 0
    %19 = vsyncpa [#allocation11], 0
    %20 = vsyncpa [#allocation14], 0
    %21 = vsyncpa [#allocation6], 0
    %s22 = scalar_lea.sflag [#allocation6], 1
    %23 = vsyncpa %s22, 0
    %24 = vsyncpa [#allocation18], 0
    %s25 = scalar_lea.sflag [#allocation18], 1
    %26 = vsyncpa %s25, 0
    loop: start=0, step=1, limit=4
    $region2: #{tpu_custom_call.1} parent=1 // loop_pre_header
      _
    $region3: #{tpu_custom_call.1} parent=1 // loop_header
      %s28 = sphi 0, %s32
      %p29 = scmp.ge.s32.totalorder %s28, 4
      %s38 = sphi 0, %s40
      %s41 = sphi 0, %s38
      %s42 = sphi 0, %s41
      %s58 = sphi 0, %s42
      %s62 = sphi 0, %s62
      %s64 = sphi 0, %s62
      %s65 = sphi 0, %s64
      %s79 = sphi 0, %s65
      %s83 = sphi 0, %s83
      %s85 = sphi 0, %s83
      %s86 = sphi 0, %s85
      %s100 = sphi 0, %s86
      %s104 = sphi 0, %s104
      %s106 = sphi 0, %s104
      %s107 = sphi 0, %s106
      %s121 = sphi 0, %s107
      %s125 = sphi 0, %s125
      %s127 = sphi 0, %s125
      %s128 = sphi 0, %s127
      %s142 = sphi 0, %s128
      %s146 = sphi 0, %s146
      %s148 = sphi 0, %s146
      %s149 = sphi 0, %s148
      %s163 = sphi 0, %s149
      %s167 = sphi 0, %s167
      %s169 = sphi 0, %s167
      %s170 = sphi 0, %s169
      %s184 = sphi 0, %s170
      %s190 = sphi 0, %s192
      %s193 = sphi 0, %s190
      %s194 = sphi 0, %s193
      %s210 = sphi 0, %s194
      %s216 = sphi 0, %s218
      %s219 = sphi 0, %s216
      %s220 = sphi 0, %s219
      %s236 = sphi 0, %s220
      %s242 = sphi 0, %s244
      %s245 = sphi 0, %s242
      %s246 = sphi 0, %s245
      %s262 = sphi 0, %s246
    $region4: #{tpu_custom_call.1} parent=1 // loop_header_branch
      %31 = sbr.rel (%p29) target = $region8
    $region5: #{tpu_custom_call.1} parent=1 // loop_body
      %s33 = ssub.s32 %s28, 1
      %s34 = ssub.s32 %s28, 2
      %s35 = sadd.s32 %s28, 1
      %s36 = ssub.s32 %s28, %s35
      %p37 = scmp.eq.s32.totalorder %s36, 0
      %s39 = sadd.s32 %s38, 1
      %s40 = scalar_select %p37, %s38, %s39
      %p43 = pneg %p37
      %p44 = scmp.eq.s32.totalorder %s28, 1
      %p45 = por %p43, %p44
      %p46 = scmp.ne.s32.totalorder %s38, %s41
      %p47 = scmp.eq.s32.totalorder %s28, 0
      %p48 = por %p46, %p47
      %p49 = scmp.ne.s32.totalorder %s38, %s41
      %p50 = scmp.eq.s32.totalorder %s33, 1
      %p51 = por %p49, %p50
      %p52 = scmp.ne.s32.totalorder %s41, %s42
      %p53 = scmp.eq.s32.totalorder %s33, 0
      %p54 = por %p52, %p53
      %p55 = scmp.ne.s32.totalorder %s41, %s42
      %p56 = scmp.eq.s32.totalorder %s34, 1
      %p57 = por %p55, %p56
      %p59 = scmp.ne.s32.totalorder %s42, %s58
      %p60 = scmp.eq.s32.totalorder %s34, 0
      %p61 = por %p59, %p60
      %s63 = sadd.s32 %s62, 1
      %p66 = scmp.eq.s32.totalorder %s28, 1
      %p67 = scmp.ne.s32.totalorder %s62, %s64
      %p68 = scmp.eq.s32.totalorder %s28, 0
      %p69 = por %p67, %p68
      %p70 = scmp.ne.s32.totalorder %s62, %s64
      %p71 = scmp.eq.s32.totalorder %s33, 1
      %p72 = por %p70, %p71
      %p73 = scmp.ne.s32.totalorder %s64, %s65
      %p74 = scmp.eq.s32.totalorder %s33, 0
      %p75 = por %p73, %p74
      %p76 = scmp.ne.s32.totalorder %s64, %s65
      %p77 = scmp.eq.s32.totalorder %s34, 1
      %p78 = por %p76, %p77
      %p80 = scmp.ne.s32.totalorder %s65, %s79
      %p81 = scmp.eq.s32.totalorder %s34, 0
      %p82 = por %p80, %p81
      %s84 = sadd.s32 %s83, 1
      %p87 = scmp.eq.s32.totalorder %s28, 1
      %p88 = scmp.ne.s32.totalorder %s83, %s85
      %p89 = scmp.eq.s32.totalorder %s28, 0
      %p90 = por %p88, %p89
      %p91 = scmp.ne.s32.totalorder %s83, %s85
      %p92 = scmp.eq.s32.totalorder %s33, 1
      %p93 = por %p91, %p92
      %p94 = scmp.ne.s32.totalorder %s85, %s86
      %p95 = scmp.eq.s32.totalorder %s33, 0
      %p96 = por %p94, %p95
      %p97 = scmp.ne.s32.totalorder %s85, %s86
      %p98 = scmp.eq.s32.totalorder %s34, 1
      %p99 = por %p97, %p98
      %p101 = scmp.ne.s32.totalorder %s86, %s100
      %p102 = scmp.eq.s32.totalorder %s34, 0
      %p103 = por %p101, %p102
      %s105 = sadd.s32 %s104, 1
      %p108 = scmp.eq.s32.totalorder %s28, 1
      %p109 = scmp.ne.s32.totalorder %s104, %s106
      %p110 = scmp.eq.s32.totalorder %s28, 0
      %p111 = por %p109, %p110
      %p112 = scmp.ne.s32.totalorder %s104, %s106
      %p113 = scmp.eq.s32.totalorder %s33, 1
      %p114 = por %p112, %p113
      %p115 = scmp.ne.s32.totalorder %s106, %s107
      %p116 = scmp.eq.s32.totalorder %s33, 0
      %p117 = por %p115, %p116
      %p118 = scmp.ne.s32.totalorder %s106, %s107
      %p119 = scmp.eq.s32.totalorder %s34, 1
      %p120 = por %p118, %p119
      %p122 = scmp.ne.s32.totalorder %s107, %s121
      %p123 = scmp.eq.s32.totalorder %s34, 0
      %p124 = por %p122, %p123
      %s126 = sadd.s32 %s125, 1
      %p129 = scmp.eq.s32.totalorder %s28, 1
      %p130 = scmp.ne.s32.totalorder %s125, %s127
      %p131 = scmp.eq.s32.totalorder %s28, 0
      %p132 = por %p130, %p131
      %p133 = scmp.ne.s32.totalorder %s125, %s127
      %p134 = scmp.eq.s32.totalorder %s33, 1
      %p135 = por %p133, %p134
      %p136 = scmp.ne.s32.totalorder %s127, %s128
      %p137 = scmp.eq.s32.totalorder %s33, 0
      %p138 = por %p136, %p137
      %p139 = scmp.ne.s32.totalorder %s127, %s128
      %p140 = scmp.eq.s32.totalorder %s34, 1
      %p141 = por %p139, %p140
      %p143 = scmp.ne.s32.totalorder %s128, %s142
      %p144 = scmp.eq.s32.totalorder %s34, 0
      %p145 = por %p143, %p144
      %s147 = sadd.s32 %s146, 1
      %p150 = scmp.eq.s32.totalorder %s28, 1
      %p151 = scmp.ne.s32.totalorder %s146, %s148
      %p152 = scmp.eq.s32.totalorder %s28, 0
      %p153 = por %p151, %p152
      %p154 = scmp.ne.s32.totalorder %s146, %s148
      %p155 = scmp.eq.s32.totalorder %s33, 1
      %p156 = por %p154, %p155
      %p157 = scmp.ne.s32.totalorder %s148, %s149
      %p158 = scmp.eq.s32.totalorder %s33, 0
      %p159 = por %p157, %p158
      %p160 = scmp.ne.s32.totalorder %s148, %s149
      %p161 = scmp.eq.s32.totalorder %s34, 1
      %p162 = por %p160, %p161
      %p164 = scmp.ne.s32.totalorder %s149, %s163
      %p165 = scmp.eq.s32.totalorder %s34, 0
      %p166 = por %p164, %p165
      %s168 = sadd.s32 %s167, 1
      %p171 = scmp.eq.s32.totalorder %s28, 1
      %p172 = scmp.ne.s32.totalorder %s167, %s169
      %p173 = scmp.eq.s32.totalorder %s28, 0
      %p174 = por %p172, %p173
      %p175 = scmp.ne.s32.totalorder %s167, %s169
      %p176 = scmp.eq.s32.totalorder %s33, 1
      %p177 = por %p175, %p176
      %p178 = scmp.ne.s32.totalorder %s169, %s170
      %p179 = scmp.eq.s32.totalorder %s33, 0
      %p180 = por %p178, %p179
      %p181 = scmp.ne.s32.totalorder %s169, %s170
      %p182 = scmp.eq.s32.totalorder %s34, 1
      %p183 = por %p181, %p182
      %p185 = scmp.ne.s32.totalorder %s170, %s184
      %p186 = scmp.eq.s32.totalorder %s34, 0
      %p187 = por %p185, %p186
      %s188 = ssub.s32 %s28, %s35
      %p189 = scmp.eq.s32.totalorder %s188, 0
      %s191 = sadd.s32 %s190, 1
      %s192 = scalar_select %p189, %s190, %s191
      %p195 = pneg %p189
      %p196 = scmp.eq.s32.totalorder %s28, 1
      %p197 = por %p195, %p196
      %p198 = scmp.ne.s32.totalorder %s190, %s193
      %p199 = scmp.eq.s32.totalorder %s28, 0
      %p200 = por %p198, %p199
      %p201 = scmp.ne.s32.totalorder %s190, %s193
      %p202 = scmp.eq.s32.totalorder %s33, 1
      %p203 = por %p201, %p202
      %p204 = scmp.ne.s32.totalorder %s193, %s194
      %p205 = scmp.eq.s32.totalorder %s33, 0
      %p206 = por %p204, %p205
      %p207 = scmp.ne.s32.totalorder %s193, %s194
      %p208 = scmp.eq.s32.totalorder %s34, 1
      %p209 = por %p207, %p208
      %p211 = scmp.ne.s32.totalorder %s194, %s210
      %p212 = scmp.eq.s32.totalorder %s34, 0
      %p213 = por %p211, %p212
      %s214 = ssub.s32 %s28, %s35
      %p215 = scmp.eq.s32.totalorder %s214, 0
      %s217 = sadd.s32 %s216, 1
      %s218 = scalar_select %p215, %s216, %s217
      %p221 = pneg %p215
      %p222 = scmp.eq.s32.totalorder %s28, 1
      %p223 = por %p221, %p222
      %p224 = scmp.ne.s32.totalorder %s216, %s219
      %p225 = scmp.eq.s32.totalorder %s28, 0
      %p226 = por %p224, %p225
      %p227 = scmp.ne.s32.totalorder %s216, %s219
      %p228 = scmp.eq.s32.totalorder %s33, 1
      %p229 = por %p227, %p228
      %p230 = scmp.ne.s32.totalorder %s219, %s220
      %p231 = scmp.eq.s32.totalorder %s33, 0
      %p232 = por %p230, %p231
      %p233 = scmp.ne.s32.totalorder %s219, %s220
      %p234 = scmp.eq.s32.totalorder %s34, 1
      %p235 = por %p233, %p234
      %p237 = scmp.ne.s32.totalorder %s220, %s236
      %p238 = scmp.eq.s32.totalorder %s34, 0
      %p239 = por %p237, %p238
      %s240 = ssub.s32 %s28, %s35
      %p241 = scmp.eq.s32.totalorder %s240, 0
      %s243 = sadd.s32 %s242, 1
      %s244 = scalar_select %p241, %s242, %s243
      %p247 = pneg %p241
      %p248 = scmp.eq.s32.totalorder %s28, 1
      %p249 = por %p247, %p248
      %p250 = scmp.ne.s32.totalorder %s242, %s245
      %p251 = scmp.eq.s32.totalorder %s28, 0
      %p252 = por %p250, %p251
      %p253 = scmp.ne.s32.totalorder %s242, %s245
      %p254 = scmp.eq.s32.totalorder %s33, 1
      %p255 = por %p253, %p254
      %p256 = scmp.ne.s32.totalorder %s245, %s246
      %p257 = scmp.eq.s32.totalorder %s33, 0
      %p258 = por %p256, %p257
      %p259 = scmp.ne.s32.totalorder %s245, %s246
      %p260 = scmp.eq.s32.totalorder %s34, 1
      %p261 = por %p259, %p260
      %p263 = scmp.ne.s32.totalorder %s246, %s262
      %p264 = scmp.eq.s32.totalorder %s34, 0
      %p265 = por %p263, %p264
      %p266 = scmp.le.s32.totalorder 1, %s28
      %p267 = scmp.lt.s32.totalorder %s28, 3
      %p268 = pnand %p266, %p267
      %p269 = pneg %p268
      // Predicated region
      $region9: #{tpu_custom_call.1} parent=5 // pred_check
        _
      $region10: #{tpu_custom_call.1} parent=5 // pred_check_branch
        %271 = sbr.rel (%p268) target = $region12
      $region11: #{tpu_custom_call.1} parent=5 // pred_region
        %s272 = ssub.s32 %s28, 1
        // Predicated region
        $region13: #{tpu_custom_call.1} parent=11 // pred_check
          %p273 = pneg %p75
        $region14: #{tpu_custom_call.1} parent=11 // pred_check_branch
          %275 = sbr.rel (%p273) target = $region16
        $region15: #{tpu_custom_call.1} parent=11 // pred_region
          %s277 = ssub.s32 128, 128
          %278 = vsyncadd [#allocation8], %s277
          %s279 = sshll.u32 [#allocation7], 4
          %s280 = int_to_ptr.vmem [resolvable:$true] %s279
          %285 = dma.hbm_to_vmem [thread:$0]  %s1, 128, %s280, [#allocation8], 64, 64, 4
        $region16: #{tpu_custom_call.1} parent=11 // pred_fallthru
          _
        // Predicated region
        $region17: #{tpu_custom_call.1} parent=11 // pred_check
          %p286 = pneg %p96
        $region18: #{tpu_custom_call.1} parent=11 // pred_check_branch
          %288 = sbr.rel (%p286) target = $region20
        $region19: #{tpu_custom_call.1} parent=11 // pred_region
          %s290 = ssub.s32 16, 16
          %291 = vsyncadd [#allocation8], %s290
          %s293 = sshll.u32 [#allocation9], 4
          %s294 = int_to_ptr.vmem [resolvable:$true] %s293
          %296 = dma.hbm_to_vmem [thread:$0]  %s2, 16, %s294, [#allocation8]
        $region20: #{tpu_custom_call.1} parent=11 // pred_fallthru
          _
        // Predicated region
        $region21: #{tpu_custom_call.1} parent=11 // pred_check
          %p297 = pneg %p117
        $region22: #{tpu_custom_call.1} parent=11 // pred_check_branch
          %299 = sbr.rel (%p297) target = $region24
        $region23: #{tpu_custom_call.1} parent=11 // pred_region
          %s301 = ssub.s32 320, 320
          %302 = vsyncadd [#allocation11], %s301
          %s303 = sshll.u32 [#allocation10], 4
          %s304 = int_to_ptr.vmem [resolvable:$true] %s303
          %309 = dma.hbm_to_vmem [thread:$0]  %s3, 320, %s304, [#allocation11], 64, 64, 4
        $region24: #{tpu_custom_call.1} parent=11 // pred_fallthru
          _
        // Predicated region
        $region25: #{tpu_custom_call.1} parent=11 // pred_check
          %p310 = pneg %p138
        $region26: #{tpu_custom_call.1} parent=11 // pred_check_branch
          %312 = sbr.rel (%p310) target = $region28
        $region27: #{tpu_custom_call.1} parent=11 // pred_region
          %s314 = ssub.s32 32, 32
          %315 = vsyncadd [#allocation11], %s314
          %s317 = sshll.u32 [#allocation12], 4
          %s318 = int_to_ptr.vmem [resolvable:$true] %s317
          %320 = dma.hbm_to_vmem [thread:$0]  %s4, 32, %s318, [#allocation11]
        $region28: #{tpu_custom_call.1} parent=11 // pred_fallthru
          _
        // Predicated region
        $region29: #{tpu_custom_call.1} parent=11 // pred_check
          %p321 = pneg %p159
        $region30: #{tpu_custom_call.1} parent=11 // pred_check_branch
          %323 = sbr.rel (%p321) target = $region32
        $region31: #{tpu_custom_call.1} parent=11 // pred_region
          %s325 = ssub.s32 32, 32
          %326 = vsyncadd [#allocation14], %s325
          %s328 = sshll.u32 [#allocation13], 4
          %s329 = int_to_ptr.vmem [resolvable:$true] %s328
          %331 = dma.hbm_to_vmem [thread:$0]  %s5, 32, %s329, [#allocation14]
        $region32: #{tpu_custom_call.1} parent=11 // pred_fallthru
          _
        // Predicated region
        $region33: #{tpu_custom_call.1} parent=11 // pred_check
          %p332 = pneg %p180
        $region34: #{tpu_custom_call.1} parent=11 // pred_check_branch
          %334 = sbr.rel (%p332) target = $region36
        $region35: #{tpu_custom_call.1} parent=11 // pred_region
          %s336 = ssub.s32 64, 64
          %337 = vsyncadd [#allocation14], %s336
          %s339 = sshll.u32 [#allocation15], 4
          %s340 = int_to_ptr.vmem [resolvable:$true] %s339
          %342 = dma.hbm_to_vmem [thread:$0]  %s6, 64, %s340, [#allocation14]
        $region36: #{tpu_custom_call.1} parent=11 // pred_fallthru
          _
      $region12: #{tpu_custom_call.1} parent=5 // pred_fallthru
        _
      %p343 = scmp.lt.s32.totalorder %s28, 2
      // Predicated region
      $region37: #{tpu_custom_call.1} parent=5 // pred_check
        %p344 = pneg %p343
      $region38: #{tpu_custom_call.1} parent=5 // pred_check_branch
        %346 = sbr.rel (%p344) target = $region40
      $region39: #{tpu_custom_call.1} parent=5 // pred_region
        // Predicated region
        $region41: #{tpu_custom_call.1} parent=39 // pred_check
          %p347 = pneg %p48
        $region42: #{tpu_custom_call.1} parent=39 // pred_check_branch
          %349 = sbr.rel (%p347) target = $region44
        $region43: #{tpu_custom_call.1} parent=39 // pred_region
          %s350 = sand.u32 %s38, 1
          %s351 = scalar_lea.sflag [#allocation5], %s350
          %s352 = sand.u32 %s38, 1
          %s353 = smul.addr %s352, 32
          %s354 = scalar_lea.vmem [#allocation4], %s353
          %s356 = ssub.s32 512, 512
          %357 = vsyncadd %s351, %s356
          %s358 = smul.addr %s28, 8
          %s359 = smul.addr %s358, 64
          %s360 = scalar_lea.hbm %s0, %s359
          %s361 = sshll.u32 %s354, 4
          %s362 = int_to_ptr.vmem [resolvable:$true] %s361
          %367 = dma.hbm_to_vmem [thread:$0]  %s360, 512, %s362, %s351, 64, 64, 4
        $region44: #{tpu_custom_call.1} parent=39 // pred_fallthru
          _
      $region40: #{tpu_custom_call.1} parent=5 // pred_fallthru
        _
      %p368 = scmp.le.s32.totalorder 1, %s28
      %p369 = scmp.lt.s32.totalorder %s28, 3
      %p370 = pnand %p368, %p369
      %p371 = pneg %p370
      // Predicated region
      $region45: #{tpu_custom_call.1} parent=5 // pred_check
        _
      $region46: #{tpu_custom_call.1} parent=5 // pred_check_branch
        %373 = sbr.rel (%p370) target = $region48
      $region47: #{tpu_custom_call.1} parent=5 // pred_region
        %s374 = ssub.s32 %s28, 1
        %s375 = sand.u32 %s41, 1
        %s376 = scalar_lea.sflag [#allocation5], %s375
        %s377 = sand.u32 %s41, 1
        %s378 = smul.addr %s377, 32
        %s379 = scalar_lea.vmem [#allocation4], %s378
        // Predicated region
        $region49: #{tpu_custom_call.1} parent=47 // pred_check
          %p380 = pneg %p54
        $region50: #{tpu_custom_call.1} parent=47 // pred_check_branch
          %382 = sbr.rel (%p380) target = $region52
        $region51: #{tpu_custom_call.1} parent=47 // pred_region
          %383 = dma.done %s376, 512
        $region52: #{tpu_custom_call.1} parent=47 // pred_fallthru
          _
        // Predicated region
        $region53: #{tpu_custom_call.1} parent=47 // pred_check
          %p384 = pneg %p75
        $region54: #{tpu_custom_call.1} parent=47 // pred_check_branch
          %386 = sbr.rel (%p384) target = $region56
        $region55: #{tpu_custom_call.1} parent=47 // pred_region
          %387 = dma.done [#allocation8], 128
        $region56: #{tpu_custom_call.1} parent=47 // pred_fallthru
          _
        // Predicated region
        $region57: #{tpu_custom_call.1} parent=47 // pred_check
          %p388 = pneg %p96
        $region58: #{tpu_custom_call.1} parent=47 // pred_check_branch
          %390 = sbr.rel (%p388) target = $region60
        $region59: #{tpu_custom_call.1} parent=47 // pred_region
          %391 = dma.done [#allocation8], 16
        $region60: #{tpu_custom_call.1} parent=47 // pred_fallthru
          _
        // Predicated region
        $region61: #{tpu_custom_call.1} parent=47 // pred_check
          %p392 = pneg %p117
        $region62: #{tpu_custom_call.1} parent=47 // pred_check_branch
          %394 = sbr.rel (%p392) target = $region64
        $region63: #{tpu_custom_call.1} parent=47 // pred_region
          %395 = dma.done [#allocation11], 320
        $region64: #{tpu_custom_call.1} parent=47 // pred_fallthru
          _
        // Predicated region
        $region65: #{tpu_custom_call.1} parent=47 // pred_check
          %p396 = pneg %p138
        $region66: #{tpu_custom_call.1} parent=47 // pred_check_branch
          %398 = sbr.rel (%p396) target = $region68
        $region67: #{tpu_custom_call.1} parent=47 // pred_region
          %399 = dma.done [#allocation11], 32
        $region68: #{tpu_custom_call.1} parent=47 // pred_fallthru
          _
        // Predicated region
        $region69: #{tpu_custom_call.1} parent=47 // pred_check
          %p400 = pneg %p159
        $region70: #{tpu_custom_call.1} parent=47 // pred_check_branch
          %402 = sbr.rel (%p400) target = $region72
        $region71: #{tpu_custom_call.1} parent=47 // pred_region
          %403 = dma.done [#allocation14], 32
        $region72: #{tpu_custom_call.1} parent=47 // pred_fallthru
          _
        // Predicated region
        $region73: #{tpu_custom_call.1} parent=47 // pred_check
          %p404 = pneg %p180
        $region74: #{tpu_custom_call.1} parent=47 // pred_check_branch
          %406 = sbr.rel (%p404) target = $region76
        $region75: #{tpu_custom_call.1} parent=47 // pred_region
          %407 = dma.done [#allocation14], 64
        $region76: #{tpu_custom_call.1} parent=47 // pred_fallthru
          _
        %s408 = sand.u32 %s41, 1
        %s409 = scalar_lea.sflag [#allocation5], %s408
        %s410 = sand.u32 %s41, 1
        %s411 = smul.addr %s410, 32
        %s412 = scalar_lea.vmem [#allocation4], %s411
        %p413 = pneg %p54
        %p414 = pneg %p51
        %p415 = pneg %p75
        %p416 = pneg %p72
        %p417 = pneg %p96
        %p418 = pneg %p93
        %p419 = pneg %p117
        %p420 = pneg %p114
        %p421 = pneg %p138
        %p422 = pneg %p135
        %p423 = pneg %p159
        %p424 = pneg %p156
        %p425 = pneg %p180
        %p426 = pneg %p177
        %p427 = pneg %p206
        %p428 = pneg %p203
        %s429 = sand.u32 %s193, 1
        %s430 = scalar_lea.sflag [#allocation6], %s429
        %s431 = sand.u32 %s193, 1
        %s432 = smul.addr %s431, 32
        %s433 = scalar_lea.vmem [#allocation16], %s432
        %p434 = pneg %p232
        %p435 = pneg %p229
        %s436 = sand.u32 %s33, 1
        %s437 = scalar_lea.sflag [#allocation18], %s436
        %s438 = sand.u32 %s219, 1
        %s439 = scalar_lea.vmem [#allocation17], %s438
        %p440 = pneg %p258
        %p441 = pneg %p255
        %s442 = sand.u32 %s33, 1
        %s443 = scalar_lea.sflag [#allocation18], %s442
        %s444 = sand.u32 %s245, 1
        %s445 = scalar_lea.vmem [#allocation19], %s444
        %v447 = vld [vmem:[%s379] sm:$0xf]
        %v448 = vld [vmem:[%s379 + $0x4] sm:$0xf]
        %v449 = vld [vmem:[%s379 + $0x8] sm:$0xf]
        %v450 = vld [vmem:[%s379 + $0xc] sm:$0xf]
        %v451 = vld [vmem:[%s379 + $0x10] sm:$0xf]
        %v452 = vld [vmem:[%s379 + $0x14] sm:$0xf]
        %v453 = vld [vmem:[%s379 + $0x18] sm:$0xf]
        %v454 = vld [vmem:[%s379 + $0x1c] sm:$0xf]
        %v455 = vld [vmem:[#allocation7] sm:$0xf]
        %v456 = vld [vmem:[#allocation7 + $0x4] sm:$0xf]
        %v457 = vld [vmem:[#allocation9] sm:$0x1]
        %v459 = vlaneseq
        %v460 = vshrl.u32 %v459, 7
        %v461 = vsub.s32 0, %v460
        %v462 = vrot.slane %v457, %v461
        %v472 = vunpack.c.l.b16 %v447
        %v473 = vunpack.c.l.b16 %v448
        %v474 = vunpack.c.l.b16 %v449
        %v475 = vunpack.c.l.b16 %v450
        %v476 = vunpack.c.l.b16 %v451
        %v477 = vunpack.c.l.b16 %v452
        %v478 = vunpack.c.l.b16 %v453
        %v479 = vunpack.c.l.b16 %v454
        %v480 = vpack.c.b16 %v473, %v472
        %v481 = vpack.c.b16 %v475, %v474
        %v482 = vpack.c.b16 %v477, %v476
        %v483 = vpack.c.b16 %v479, %v478
        %v486 = vunpack.c.l.b16 %v455
        %v487 = vunpack.c.l.b16 %v456
        %v488 = vpack.c.b16 %v487, %v486
        %vm490 = vcmask 130048
        %v492 = vsel %vm490, %v480, 0
        %v495 = vsel %vm490, %v481, 0
        %v498 = vsel %vm490, %v482, 0
        %v501 = vsel %vm490, %v483, 0
        %503 = vmatprep.subr.bf16.mxu0 0
        %504 = vmatpush1.bf16.msra.mxu0 %v488
        %505 = vmatprep.subr.bf16.mxu0 0
        %506 = vmatpush1.bf16.msra.mxu0 0
        %507 = vmatprep.subr.bf16.mxu0 0
        %508 = vmatpush1.bf16.msra.mxu0 0
        %509 = vmatprep.subr.bf16.mxu0 0
        %510 = vmatpush1.bf16.msra.mxu0 0
        %511 = vmatprep.subr.bf16.mxu0 0
        %512 = vmatpush1.bf16.msra.mxu0 0
        %513 = vmatprep.subr.bf16.mxu0 0
        %514 = vmatpush1.bf16.msra.mxu0 0
        %515 = vmatprep.subr.bf16.mxu0 0
        %516 = vmatpush1.bf16.msra.mxu0 0
        %517 = vmatprep.subr.bf16.mxu0 0
        %518 = vmatpush1.bf16.msra.mxu0 0
        %519 = vmatprep.subr.bf16.mxu0 0
        %520 = vmatpush1.bf16.msra.mxu0 0
        %521 = vmatprep.subr.bf16.mxu0 0
        %522 = vmatpush1.bf16.msra.mxu0 0
        %523 = vmatprep.subr.bf16.mxu0 0
        %524 = vmatpush1.bf16.msra.mxu0 0
        %525 = vmatprep.subr.bf16.mxu0 0
        %526 = vmatpush1.bf16.msra.mxu0 0
        %527 = vmatprep.subr.bf16.mxu0 0
        %528 = vmatpush1.bf16.msra.mxu0 0
        %529 = vmatprep.subr.bf16.mxu0 0
        %530 = vmatpush1.bf16.msra.mxu0 0
        %531 = vmatprep.subr.bf16.mxu0 0
        %532 = vmatpush1.bf16.msra.mxu0 0
        %533 = vmatprep.subr.bf16.mxu0 0
        %534 = vmatpush1.bf16.msra.mxu0 0
        %535 = vmatprep.mubr.bf16.mxu0 0
        %536 = vmatmul.mubr.bf16.gmra.mrb[0].mxu0 %v492
        %v537 = vpop.f32.mrb[0].mxu0
        %v538 = vadd.f32 %v462, %v537
        %v539 = vpop.f32.mrb[0].mxu0
        %v540 = vpop.f32.mrb[0].mxu0
        %v541 = vadd.f32 %v462, %v540
        %v542 = vpop.f32.mrb[0].mxu0
        %543 = vmatprep.mubr.bf16.mxu0 0
        %544 = vmatmul.mubr.bf16.gmra.mrb[0].mxu0 %v495
        %v545 = vpop.f32.mrb[0].mxu0
        %v546 = vadd.f32 %v462, %v545
        %v547 = vpop.f32.mrb[0].mxu0
        %v548 = vpop.f32.mrb[0].mxu0
        %v549 = vadd.f32 %v462, %v548
        %v550 = vpop.f32.mrb[0].mxu0
        %551 = vmatprep.mubr.bf16.mxu0 0
        %552 = vmatmul.mubr.bf16.gmra.mrb[0].mxu0 %v498
        %v553 = vpop.f32.mrb[0].mxu0
        %v554 = vadd.f32 %v462, %v553
        %v555 = vpop.f32.mrb[0].mxu0
        %v556 = vpop.f32.mrb[0].mxu0
        %v557 = vadd.f32 %v462, %v556
        %v558 = vpop.f32.mrb[0].mxu0
        %559 = vmatprep.mubr.bf16.mxu0 0
        %560 = vmatmul.mubr.bf16.gmra.mrb[0].mxu0 %v501
        %v561 = vpop.f32.mrb[0].mxu0
        %v562 = vadd.f32 %v462, %v561
        %v563 = vpop.f32.mrb[0].mxu0
        %v564 = vpop.f32.mrb[0].mxu0
        %v565 = vadd.f32 %v462, %v564
        %v566 = vpop.f32.mrb[0].mxu0
        %567 = vdwg.mxu0
        %vm568 = vcmask 27648
        %569 = vst.msk [vmem:[#allocation2] sm:$0xf] %vm568, 0
        %570 = vst.msk [vmem:[#allocation2 + $0x4] sm:$0xf] %vm568, 0
        %vm571 = vcmask 25600
        %572 = vst.msk [vmem:[#allocation2 + $0x8] sm:$0x3] %vm571, 0
        %573 = vst.msk [vmem:[#allocation2 + $0xc] sm:$0xf] %vm568, 0
        %574 = vst.msk [vmem:[#allocation2 + $0x10] sm:$0xf] %vm568, 0
        %575 = vst.msk [vmem:[#allocation2 + $0x14] sm:$0x3] %vm571, 0
        %576 = vst.msk [vmem:[#allocation2 + $0x18] sm:$0xf] %vm568, 0
        %577 = vst.msk [vmem:[#allocation2 + $0x1c] sm:$0xf] %vm568, 0
        %578 = vst.msk [vmem:[#allocation2 + $0x20] sm:$0x3] %vm571, 0
        %579 = vst.msk [vmem:[#allocation2 + $0x24] sm:$0xf] %vm568, 0
        %580 = vst.msk [vmem:[#allocation2 + $0x28] sm:$0xf] %vm568, 0
        %581 = vst.msk [vmem:[#allocation2 + $0x2c] sm:$0x3] %vm571, 0
        %582 = vst.msk [vmem:[#allocation2 + $0x30] sm:$0xf] %vm568, 0
        %583 = vst.msk [vmem:[#allocation2 + $0x34] sm:$0xf] %vm568, 0
        %584 = vst.msk [vmem:[#allocation2 + $0x38] sm:$0x3] %vm571, 0
        %585 = vst.msk [vmem:[#allocation2 + $0x3c] sm:$0xf] %vm568, 0
        %586 = vst.msk [vmem:[#allocation2 + $0x40] sm:$0xf] %vm568, 0
        %587 = vst.msk [vmem:[#allocation2 + $0x44] sm:$0x3] %vm571, 0
        %s588 = scalar_lea.vmem [#allocation2], 168
        %589 = vst.msk [vmem:[%s588] sm:$0xf] %vm568, 0
        %590 = vst.msk [vmem:[%s588 + $0x4] sm:$0xf] %vm568, 0
        %591 = vst.msk [vmem:[%s588 + $0x8] sm:$0x3] %vm571, 0
        %592 = vst.msk [vmem:[%s588 + $0xc] sm:$0xf] %vm568, 0
        %593 = vst.msk [vmem:[%s588 + $0x10] sm:$0xf] %vm568, 0
        %594 = vst.msk [vmem:[%s588 + $0x14] sm:$0x3] %vm571, 0
        %595 = vst.msk [vmem:[%s588 + $0x18] sm:$0xf] %vm568, 0
        %596 = vst.msk [vmem:[%s588 + $0x1c] sm:$0xf] %vm568, 0
        %597 = vst.msk [vmem:[%s588 + $0x20] sm:$0x3] %vm571, 0
        %598 = vst.msk [vmem:[%s588 + $0x24] sm:$0xf] %vm568, 0
        %599 = vst.msk [vmem:[%s588 + $0x28] sm:$0xf] %vm568, 0
        %600 = vst.msk [vmem:[%s588 + $0x2c] sm:$0x3] %vm571, 0
        %601 = vst.msk [vmem:[%s588 + $0x30] sm:$0xf] %vm568, 0
        %602 = vst.msk [vmem:[%s588 + $0x34] sm:$0xf] %vm568, 0
        %603 = vst.msk [vmem:[%s588 + $0x38] sm:$0x3] %vm571, 0
        %604 = vst.msk [vmem:[%s588 + $0x3c] sm:$0xf] %vm568, 0
        %605 = vst.msk [vmem:[%s588 + $0x40] sm:$0xf] %vm568, 0
        %606 = vst.msk [vmem:[%s588 + $0x44] sm:$0x3] %vm571, 0
        %s607 = scalar_lea.vmem [#allocation2], 72
        %vm608 = vcmask 26624
        %609 = vst.msk [vmem:[%s607] sm:$0x7] %vm608, 0
        %610 = vst.msk [vmem:[%s607 + $0xc] sm:$0x7] %vm608, 0
        %611 = vst.msk [vmem:[%s607 + $0x18] sm:$0x7] %vm608, 0
        %612 = vst.msk [vmem:[%s607 + $0x24] sm:$0x7] %vm608, 0
        %613 = vst.msk [vmem:[%s607 + $0x30] sm:$0x7] %vm608, 0
        %614 = vst.msk [vmem:[%s607 + $0x3c] sm:$0x7] %vm608, 0
        %615 = vst.msk [vmem:[%s607 + $0x48] sm:$0x7] %vm608, 0
        %616 = vst.msk [vmem:[%s607 + $0x54] sm:$0x7] %vm608, 0
        %vm617 = vcmask 27651
        %618 = vst.msk [vmem:[%s607 + $0x4] sm:$0x8] %vm617, 0
        %619 = vst.msk [vmem:[%s607 + $0x8] sm:$0x3] %vm571, 0
        %620 = vst.msk [vmem:[%s607 + $0x10] sm:$0x8] %vm617, 0
        %621 = vst.msk [vmem:[%s607 + $0x14] sm:$0x3] %vm571, 0
        %622 = vst.msk [vmem:[%s607 + $0x1c] sm:$0x8] %vm617, 0
        %623 = vst.msk [vmem:[%s607 + $0x20] sm:$0x3] %vm571, 0
        %624 = vst.msk [vmem:[%s607 + $0x28] sm:$0x8] %vm617, 0
        %625 = vst.msk [vmem:[%s607 + $0x2c] sm:$0x3] %vm571, 0
        %626 = vst.msk [vmem:[%s607 + $0x34] sm:$0x8] %vm617, 0
        %627 = vst.msk [vmem:[%s607 + $0x38] sm:$0x3] %vm571, 0
        %628 = vst.msk [vmem:[%s607 + $0x40] sm:$0x8] %vm617, 0
        %629 = vst.msk [vmem:[%s607 + $0x44] sm:$0x3] %vm571, 0
        %630 = vst.msk [vmem:[%s607 + $0x4c] sm:$0x8] %vm617, 0
        %631 = vst.msk [vmem:[%s607 + $0x50] sm:$0x3] %vm571, 0
        %632 = vst.msk [vmem:[%s607 + $0x58] sm:$0x8] %vm617, 0
        %633 = vst.msk [vmem:[%s607 + $0x5c] sm:$0x3] %vm571, 0
        %v634 = vpack.c.bf16 %v541, %v538
        %v635 = vpack.c.bf16 %v549, %v546
        %v636 = vpack.c.bf16 %v557, %v554
        %v637 = vpack.c.bf16 %v565, %v562
        %v642 = vunpack.c.l.b16 %v634
        %v643 = vunpack.c.h.b16 %v634
        %v644 = vunpack.c.l.b16 %v635
        %v645 = vunpack.c.h.b16 %v635
        %v646 = vunpack.c.l.b16 %v636
        %v647 = vunpack.c.h.b16 %v636
        %v648 = vunpack.c.l.b16 %v637
        %v649 = vunpack.c.h.b16 %v637
        %v650 = vpack.c.b16 %v642, %v642
        %v651 = vpack.c.b16 %v643, %v643
        %v652 = vpack.c.b16 %v644, %v644
        %v653 = vpack.c.b16 %v645, %v645
        %v654 = vpack.c.b16 %v646, %v646
        %v655 = vpack.c.b16 %v647, %v647
        %v656 = vpack.c.b16 %v648, %v648
        %v657 = vpack.c.b16 %v649, %v649
        %v658 = vrot.slane %v650, 5
        %v659 = vrot.slane %v658, 4
        %v660 = vrot.slane %v651, 5
        %v661 = vrot.slane %v660, 4
        %v662 = vrot.slane %v652, 5
        %v663 = vrot.slane %v662, 4
        %v664 = vrot.slane %v653, 5
        %v665 = vrot.slane %v664, 4
        %v666 = vrot.slane %v654, 5
        %v667 = vrot.slane %v666, 4
        %v668 = vrot.slane %v655, 5
        %v669 = vrot.slane %v668, 4
        %v670 = vrot.slane %v656, 5
        %v671 = vrot.slane %v670, 4
        %v672 = vrot.slane %v657, 5
        %v673 = vrot.slane %v672, 4
        %690 = vst.msk [vmem:[%s607] sm:$0x8] %vm617, %v658
        %691 = vst.msk [vmem:[%s607 + $0x4] sm:$0x7] %vm608, %v659
        %692 = vst.msk [vmem:[%s607 + $0xc] sm:$0x8] %vm617, %v660
        %693 = vst.msk [vmem:[%s607 + $0x10] sm:$0x7] %vm608, %v661
        %694 = vst.msk [vmem:[%s607 + $0x18] sm:$0x8] %vm617, %v662
        %695 = vst.msk [vmem:[%s607 + $0x1c] sm:$0x7] %vm608, %v663
        %696 = vst.msk [vmem:[%s607 + $0x24] sm:$0x8] %vm617, %v664
        %697 = vst.msk [vmem:[%s607 + $0x28] sm:$0x7] %vm608, %v665
        %698 = vst.msk [vmem:[%s607 + $0x30] sm:$0x8] %vm617, %v666
        %699 = vst.msk [vmem:[%s607 + $0x34] sm:$0x7] %vm608, %v667
        %700 = vst.msk [vmem:[%s607 + $0x3c] sm:$0x8] %vm617, %v668
        %701 = vst.msk [vmem:[%s607 + $0x40] sm:$0x7] %vm608, %v669
        %702 = vst.msk [vmem:[%s607 + $0x48] sm:$0x8] %vm617, %v670
        %703 = vst.msk [vmem:[%s607 + $0x4c] sm:$0x7] %vm608, %v671
        %704 = vst.msk [vmem:[%s607 + $0x54] sm:$0x8] %vm617, %v672
        %705 = vst.msk [vmem:[%s607 + $0x58] sm:$0x7] %vm608, %v673
        %v706 = vld [vmem:[%s607] sm:$0x8]
        %v707 = vld [vmem:[%s607 + $0x4] sm:$0x7]
        %v708 = vld [vmem:[%s607 + $0xc] sm:$0x8]
        %v709 = vld [vmem:[%s607 + $0x10] sm:$0x7]
        %v710 = vld [vmem:[%s607 + $0x18] sm:$0x8]
        %v711 = vld [vmem:[%s607 + $0x1c] sm:$0x7]
        %v712 = vld [vmem:[%s607 + $0x24] sm:$0x8]
        %v713 = vld [vmem:[%s607 + $0x28] sm:$0x7]
        %v714 = vld [vmem:[%s607 + $0x30] sm:$0x8]
        %v715 = vld [vmem:[%s607 + $0x34] sm:$0x7]
        %v716 = vld [vmem:[%s607 + $0x3c] sm:$0x8]
        %v717 = vld [vmem:[%s607 + $0x40] sm:$0x7]
        %v718 = vld [vmem:[%s607 + $0x48] sm:$0x8]
        %v719 = vld [vmem:[%s607 + $0x4c] sm:$0x7]
        %v720 = vld [vmem:[%s607 + $0x54] sm:$0x8]
        %v721 = vld [vmem:[%s607 + $0x58] sm:$0x7]
        %vm738 = vcmask 1040384
        %vm739 = vcmask 1044484
        %vm740 = vmor %vm738, %vm739
        %v741 = vrot.slane %v706, 7
        %v742 = vrot.slane %v741, 4
        %v743 = vrot.slane %v707, 7
        %v744 = vsel %vm740, %v742, %v743
        %v745 = vrot.slane %v708, 7
        %v746 = vrot.slane %v745, 4
        %v747 = vrot.slane %v709, 7
        %v748 = vsel %vm740, %v746, %v747
        %v749 = vrot.slane %v710, 7
        %v750 = vrot.slane %v749, 4
        %v751 = vrot.slane %v711, 7
        %v752 = vsel %vm740, %v750, %v751
        %v753 = vrot.slane %v712, 7
        %v754 = vrot.slane %v753, 4
        %v755 = vrot.slane %v713, 7
        %v756 = vsel %vm740, %v754, %v755
        %v757 = vrot.slane %v714, 7
        %v758 = vrot.slane %v757, 4
        %v759 = vrot.slane %v715, 7
        %v760 = vsel %vm740, %v758, %v759
        %v761 = vrot.slane %v716, 7
        %v762 = vrot.slane %v761, 4
        %v763 = vrot.slane %v717, 7
        %v764 = vsel %vm740, %v762, %v763
        %v765 = vrot.slane %v718, 7
        %v766 = vrot.slane %v765, 4
        %v767 = vrot.slane %v719, 7
        %v768 = vsel %vm740, %v766, %v767
        %v769 = vrot.slane %v720, 7
        %v770 = vrot.slane %v769, 4
        %v771 = vrot.slane %v721, 7
        %v772 = vsel %vm740, %v770, %v771
        %v773 = vunpack.c.l.b16 %v744
        %v774 = vunpack.c.l.b16 %v748
        %v775 = vunpack.c.l.b16 %v752
        %v776 = vunpack.c.l.b16 %v756
        %v777 = vunpack.c.l.b16 %v760
        %v778 = vunpack.c.l.b16 %v764
        %v779 = vunpack.c.l.b16 %v768
        %v780 = vunpack.c.l.b16 %v772
        %v781 = vpack.c.b16 %v774, %v773
        %v782 = vpack.c.b16 %v776, %v775
        %v783 = vpack.c.b16 %v778, %v777
        %v784 = vpack.c.b16 %v780, %v779
        %vm789 = vcmask 31744
        %790 = vst.msk [vmem:[#allocation3] sm:$0xff] %vm789, %v781
        %791 = vst.msk [vmem:[#allocation3 + $0x8] sm:$0xff] %vm789, %v782
        %792 = vst.msk [vmem:[#allocation3 + $0x10] sm:$0xff] %vm789, %v783
        %793 = vst.msk [vmem:[#allocation3 + $0x18] sm:$0xff] %vm789, %v784
        %v794 = vld [vmem:[#allocation2] sm:$0xf]
        %v795 = vld [vmem:[#allocation2 + $0xc] sm:$0xf]
        %v796 = vld [vmem:[#allocation2 + $0x18] sm:$0xf]
        %v797 = vld [vmem:[#allocation2 + $0x24] sm:$0xf]
        %v798 = vld [vmem:[#allocation2 + $0x30] sm:$0xf]
        %v799 = vld [vmem:[#allocation2 + $0x3c] sm:$0xf]
        %v800 = vld [vmem:[#allocation2 + $0x48] sm:$0xf]
        %v801 = vld [vmem:[#allocation2 + $0x54] sm:$0xf]
        %v810 = vunpack.c.l.b16 %v794
        %v811 = vunpack.c.l.b16 %v795
        %v812 = vunpack.c.l.b16 %v796
        %v813 = vunpack.c.l.b16 %v797
        %v814 = vunpack.c.l.b16 %v798
        %v815 = vunpack.c.l.b16 %v799
        %v816 = vunpack.c.l.b16 %v800
        %v817 = vunpack.c.l.b16 %v801
        %v818 = vpack.c.b16 %v811, %v810
        %v819 = vpack.c.b16 %v813, %v812
        %v820 = vpack.c.b16 %v815, %v814
        %v821 = vpack.c.b16 %v817, %v816
        %822 = vrot.lane.b32.xlu0 %v818, 4
        %v823 = vpop.permute.xlu0 %822
        %824 = vrot.lane.b32.xlu0 %v819, 4
        %v825 = vpop.permute.xlu0 %824
        %826 = vrot.lane.b32.xlu0 %v820, 4
        %v827 = vpop.permute.xlu0 %826
        %828 = vrot.lane.b32.xlu0 %v821, 4
        %v829 = vpop.permute.xlu0 %828
        %vm834 = vcmask 64544
        %835 = vst.msk [vmem:[#allocation3] sm:$0xff] %vm834, %v823
        %836 = vst.msk [vmem:[#allocation3 + $0x8] sm:$0xff] %vm834, %v825
        %837 = vst.msk [vmem:[#allocation3 + $0x10] sm:$0xff] %vm834, %v827
        %838 = vst.msk [vmem:[#allocation3 + $0x18] sm:$0xff] %vm834, %v829
        %v839 = vld [vmem:[#allocation2] sm:$0x8]
        %v840 = vld [vmem:[#allocation2 + $0x4] sm:$0x7]
        %v841 = vld [vmem:[#allocation2 + $0xc] sm:$0x8]
        %v842 = vld [vmem:[#allocation2 + $0x10] sm:$0x7]
        %v843 = vld [vmem:[#allocation2 + $0x18] sm:$0x8]
        %v844 = vld [vmem:[#allocation2 + $0x1c] sm:$0x7]
        %v845 = vld [vmem:[#allocation2 + $0x24] sm:$0x8]
        %v846 = vld [vmem:[#allocation2 + $0x28] sm:$0x7]
        %v847 = vld [vmem:[#allocation2 + $0x30] sm:$0x8]
        %v848 = vld [vmem:[#allocation2 + $0x34] sm:$0x7]
        %v849 = vld [vmem:[#allocation2 + $0x3c] sm:$0x8]
        %v850 = vld [vmem:[#allocation2 + $0x40] sm:$0x7]
        %v851 = vld [vmem:[#allocation2 + $0x48] sm:$0x8]
        %v852 = vld [vmem:[#allocation2 + $0x4c] sm:$0x7]
        %v853 = vld [vmem:[#allocation2 + $0x54] sm:$0x8]
        %v854 = vld [vmem:[#allocation2 + $0x58] sm:$0x7]
        %v871 = vrot.slane %v839, 7
        %v872 = vrot.slane %v871, 4
        %v873 = vrot.slane %v840, 7
        %v874 = vsel %vm740, %v872, %v873
        %v875 = vrot.slane %v841, 7
        %v876 = vrot.slane %v875, 4
        %v877 = vrot.slane %v842, 7
        %v878 = vsel %vm740, %v876, %v877
        %v879 = vrot.slane %v843, 7
        %v880 = vrot.slane %v879, 4
        %v881 = vrot.slane %v844, 7
        %v882 = vsel %vm740, %v880, %v881
        %v883 = vrot.slane %v845, 7
        %v884 = vrot.slane %v883, 4
        %v885 = vrot.slane %v846, 7
        %v886 = vsel %vm740, %v884, %v885
        %v887 = vrot.slane %v847, 7
        %v888 = vrot.slane %v887, 4
        %v889 = vrot.slane %v848, 7
        %v890 = vsel %vm740, %v888, %v889
        %v891 = vrot.slane %v849, 7
        %v892 = vrot.slane %v891, 4
        %v893 = vrot.slane %v850, 7
        %v894 = vsel %vm740, %v892, %v893
        %v895 = vrot.slane %v851, 7
        %v896 = vrot.slane %v895, 4
        %v897 = vrot.slane %v852, 7
        %v898 = vsel %vm740, %v896, %v897
        %v899 = vrot.slane %v853, 7
        %v900 = vrot.slane %v899, 4
        %v901 = vrot.slane %v854, 7
        %v902 = vsel %vm740, %v900, %v901
        %v903 = vunpack.c.l.b16 %v874
        %v904 = vunpack.c.l.b16 %v878
        %v905 = vunpack.c.l.b16 %v882
        %v906 = vunpack.c.l.b16 %v886
        %v907 = vunpack.c.l.b16 %v890
        %v908 = vunpack.c.l.b16 %v894
        %v909 = vunpack.c.l.b16 %v898
        %v910 = vunpack.c.l.b16 %v902
        %v911 = vpack.c.b16 %v904, %v903
        %v912 = vpack.c.b16 %v906, %v905
        %v913 = vpack.c.b16 %v908, %v907
        %v914 = vpack.c.b16 %v910, %v909
        %915 = vrot.lane.b32.xlu0 %v911, 8
        %v916 = vpop.permute.xlu0 %915
        %917 = vrot.lane.b32.xlu0 %v912, 8
        %v918 = vpop.permute.xlu0 %917
        %919 = vrot.lane.b32.xlu0 %v913, 8
        %v920 = vpop.permute.xlu0 %919
        %921 = vrot.lane.b32.xlu0 %v914, 8
        %v922 = vpop.permute.xlu0 %921
        %vm927 = vcmask 97344
        %928 = vst.msk [vmem:[#allocation3] sm:$0xff] %vm927, %v916
        %929 = vst.msk [vmem:[#allocation3 + $0x8] sm:$0xff] %vm927, %v918
        %930 = vst.msk [vmem:[#allocation3 + $0x10] sm:$0xff] %vm927, %v920
        %931 = vst.msk [vmem:[#allocation3 + $0x18] sm:$0xff] %vm927, %v922
        %v932 = vld [vmem:[#allocation2 + $0x4] sm:$0xc]
        %v933 = vld [vmem:[#allocation2 + $0x8] sm:$0x3]
        %v934 = vld [vmem:[#allocation2 + $0x10] sm:$0xc]
        %v935 = vld [vmem:[#allocation2 + $0x14] sm:$0x3]
        %v936 = vld [vmem:[#allocation2 + $0x1c] sm:$0xc]
        %v937 = vld [vmem:[#allocation2 + $0x20] sm:$0x3]
        %v938 = vld [vmem:[#allocation2 + $0x28] sm:$0xc]
        %v939 = vld [vmem:[#allocation2 + $0x2c] sm:$0x3]
        %v940 = vld [vmem:[#allocation2 + $0x34] sm:$0xc]
        %v941 = vld [vmem:[#allocation2 + $0x38] sm:$0x3]
        %v942 = vld [vmem:[#allocation2 + $0x40] sm:$0xc]
        %v943 = vld [vmem:[#allocation2 + $0x44] sm:$0x3]
        %v944 = vld [vmem:[#allocation2 + $0x4c] sm:$0xc]
        %v945 = vld [vmem:[#allocation2 + $0x50] sm:$0x3]
        %v946 = vld [vmem:[#allocation2 + $0x58] sm:$0xc]
        %v947 = vld [vmem:[#allocation2 + $0x5c] sm:$0x3]
        %vm964 = vcmask 1041408
        %vm965 = vcmask 1045508
        %vm966 = vmor %vm964, %vm965
        %v967 = vrot.slane %v932, 6
        %v968 = vrot.slane %v967, 4
        %v969 = vrot.slane %v933, 6
        %v970 = vsel %vm966, %v968, %v969
        %v971 = vrot.slane %v934, 6
        %v972 = vrot.slane %v971, 4
        %v973 = vrot.slane %v935, 6
        %v974 = vsel %vm966, %v972, %v973
        %v975 = vrot.slane %v936, 6
        %v976 = vrot.slane %v975, 4
        %v977 = vrot.slane %v937, 6
        %v978 = vsel %vm966, %v976, %v977
        %v979 = vrot.slane %v938, 6
        %v980 = vrot.slane %v979, 4
        %v981 = vrot.slane %v939, 6
        %v982 = vsel %vm966, %v980, %v981
        %v983 = vrot.slane %v940, 6
        %v984 = vrot.slane %v983, 4
        %v985 = vrot.slane %v941, 6
        %v986 = vsel %vm966, %v984, %v985
        %v987 = vrot.slane %v942, 6
        %v988 = vrot.slane %v987, 4
        %v989 = vrot.slane %v943, 6
        %v990 = vsel %vm966, %v988, %v989
        %v991 = vrot.slane %v944, 6
        %v992 = vrot.slane %v991, 4
        %v993 = vrot.slane %v945, 6
        %v994 = vsel %vm966, %v992, %v993
        %v995 = vrot.slane %v946, 6
        %v996 = vrot.slane %v995, 4
        %v997 = vrot.slane %v947, 6
        %v998 = vsel %vm966, %v996, %v997
        %v999 = vunpack.c.l.b16 %v970
        %v1000 = vunpack.c.l.b16 %v974
        %v1001 = vunpack.c.l.b16 %v978
        %v1002 = vunpack.c.l.b16 %v982
        %v1003 = vunpack.c.l.b16 %v986
        %v1004 = vunpack.c.l.b16 %v990
        %v1005 = vunpack.c.l.b16 %v994
        %v1006 = vunpack.c.l.b16 %v998
        %v1007 = vpack.c.b16 %v1000, %v999
        %v1008 = vpack.c.b16 %v1002, %v1001
        %v1009 = vpack.c.b16 %v1004, %v1003
        %v1010 = vpack.c.b16 %v1006, %v1005
        %1011 = vrot.lane.b32.xlu0 %v1007, 12
        %v1012 = vpop.permute.xlu0 %1011
        %1013 = vrot.lane.b32.xlu0 %v1008, 12
        %v1014 = vpop.permute.xlu0 %1013
        %1015 = vrot.lane.b32.xlu0 %v1009, 12
        %v1016 = vpop.permute.xlu0 %1015
        %1017 = vrot.lane.b32.xlu0 %v1010, 12
        %v1018 = vpop.permute.xlu0 %1017
        %vm1023 = vcmask 130144
        %1024 = vst.msk [vmem:[#allocation3] sm:$0xff] %vm1023, %v1012
        %1025 = vst.msk [vmem:[#allocation3 + $0x8] sm:$0xff] %vm1023, %v1014
        %1026 = vst.msk [vmem:[#allocation3 + $0x10] sm:$0xff] %vm1023, %v1016
        %1027 = vst.msk [vmem:[#allocation3 + $0x18] sm:$0xff] %vm1023, %v1018
        %v1028 = vld [vmem:[%s607] sm:$0xf]
        %v1029 = vld [vmem:[%s607 + $0xc] sm:$0xf]
        %v1030 = vld [vmem:[%s607 + $0x18] sm:$0xf]
        %v1031 = vld [vmem:[%s607 + $0x24] sm:$0xf]
        %v1032 = vld [vmem:[%s607 + $0x30] sm:$0xf]
        %v1033 = vld [vmem:[%s607 + $0x3c] sm:$0xf]
        %v1034 = vld [vmem:[%s607 + $0x48] sm:$0xf]
        %v1035 = vld [vmem:[%s607 + $0x54] sm:$0xf]
        %v1044 = vunpack.c.l.b16 %v1028
        %v1045 = vunpack.c.l.b16 %v1029
        %v1046 = vunpack.c.l.b16 %v1030
        %v1047 = vunpack.c.l.b16 %v1031
        %v1048 = vunpack.c.l.b16 %v1032
        %v1049 = vunpack.c.l.b16 %v1033
        %v1050 = vunpack.c.l.b16 %v1034
        %v1051 = vunpack.c.l.b16 %v1035
        %v1052 = vpack.c.b16 %v1045, %v1044
        %v1053 = vpack.c.b16 %v1047, %v1046
        %v1054 = vpack.c.b16 %v1049, %v1048
        %v1055 = vpack.c.b16 %v1051, %v1050
        %1056 = vrot.lane.b32.xlu0 %v1052, 16
        %v1057 = vpop.permute.xlu0 %1056
        %1058 = vrot.lane.b32.xlu0 %v1053, 16
        %v1059 = vpop.permute.xlu0 %1058
        %1060 = vrot.lane.b32.xlu0 %v1054, 16
        %v1061 = vpop.permute.xlu0 %1060
        %1062 = vrot.lane.b32.xlu0 %v1055, 16
        %v1063 = vpop.permute.xlu0 %1062
        %vm1068 = vcmask 162944
        %1069 = vst.msk [vmem:[#allocation3] sm:$0xff] %vm1068, %v1057
        %1070 = vst.msk [vmem:[#allocation3 + $0x8] sm:$0xff] %vm1068, %v1059
        %1071 = vst.msk [vmem:[#allocation3 + $0x10] sm:$0xff] %vm1068, %v1061
        %1072 = vst.msk [vmem:[#allocation3 + $0x18] sm:$0xff] %vm1068, %v1063
        %v1073 = vld [vmem:[%s607 + $0x4] sm:$0xc]
        %v1074 = vld [vmem:[%s607 + $0x8] sm:$0x3]
        %v1075 = vld [vmem:[%s607 + $0x10] sm:$0xc]
        %v1076 = vld [vmem:[%s607 + $0x14] sm:$0x3]
        %v1077 = vld [vmem:[%s607 + $0x1c] sm:$0xc]
        %v1078 = vld [vmem:[%s607 + $0x20] sm:$0x3]
        %v1079 = vld [vmem:[%s607 + $0x28] sm:$0xc]
        %v1080 = vld [vmem:[%s607 + $0x2c] sm:$0x3]
        %v1081 = vld [vmem:[%s607 + $0x34] sm:$0xc]
        %v1082 = vld [vmem:[%s607 + $0x38] sm:$0x3]
        %v1083 = vld [vmem:[%s607 + $0x40] sm:$0xc]
        %v1084 = vld [vmem:[%s607 + $0x44] sm:$0x3]
        %v1085 = vld [vmem:[%s607 + $0x4c] sm:$0xc]
        %v1086 = vld [vmem:[%s607 + $0x50] sm:$0x3]
        %v1087 = vld [vmem:[%s607 + $0x58] sm:$0xc]
        %v1088 = vld [vmem:[%s607 + $0x5c] sm:$0x3]
        %v1105 = vrot.slane %v1073, 6
        %v1106 = vrot.slane %v1105, 4
        %v1107 = vrot.slane %v1074, 6
        %v1108 = vsel %vm966, %v1106, %v1107
        %v1109 = vrot.slane %v1075, 6
        %v1110 = vrot.slane %v1109, 4
        %v1111 = vrot.slane %v1076, 6
        %v1112 = vsel %vm966, %v1110, %v1111
        %v1113 = vrot.slane %v1077, 6
        %v1114 = vrot.slane %v1113, 4
        %v1115 = vrot.slane %v1078, 6
        %v1116 = vsel %vm966, %v1114, %v1115
        %v1117 = vrot.slane %v1079, 6
        %v1118 = vrot.slane %v1117, 4
        %v1119 = vrot.slane %v1080, 6
        %v1120 = vsel %vm966, %v1118, %v1119
        %v1121 = vrot.slane %v1081, 6
        %v1122 = vrot.slane %v1121, 4
        %v1123 = vrot.slane %v1082, 6
        %v1124 = vsel %vm966, %v1122, %v1123
        %v1125 = vrot.slane %v1083, 6
        %v1126 = vrot.slane %v1125, 4
        %v1127 = vrot.slane %v1084, 6
        %v1128 = vsel %vm966, %v1126, %v1127
        %v1129 = vrot.slane %v1085, 6
        %v1130 = vrot.slane %v1129, 4
        %v1131 = vrot.slane %v1086, 6
        %v1132 = vsel %vm966, %v1130, %v1131
        %v1133 = vrot.slane %v1087, 6
        %v1134 = vrot.slane %v1133, 4
        %v1135 = vrot.slane %v1088, 6
        %v1136 = vsel %vm966, %v1134, %v1135
        %v1137 = vunpack.c.l.b16 %v1108
        %v1138 = vunpack.c.l.b16 %v1112
        %v1139 = vunpack.c.l.b16 %v1116
        %v1140 = vunpack.c.l.b16 %v1120
        %v1141 = vunpack.c.l.b16 %v1124
        %v1142 = vunpack.c.l.b16 %v1128
        %v1143 = vunpack.c.l.b16 %v1132
        %v1144 = vunpack.c.l.b16 %v1136
        %v1145 = vpack.c.b16 %v1138, %v1137
        %v1146 = vpack.c.b16 %v1140, %v1139
        %v1147 = vpack.c.b16 %v1142, %v1141
        %v1148 = vpack.c.b16 %v1144, %v1143
        %1149 = vrot.lane.b32.xlu0 %v1145, 20
        %v1150 = vpop.permute.xlu0 %1149
        %1151 = vrot.lane.b32.xlu0 %v1146, 20
        %v1152 = vpop.permute.xlu0 %1151
        %1153 = vrot.lane.b32.xlu0 %v1147, 20
        %v1154 = vpop.permute.xlu0 %1153
        %1155 = vrot.lane.b32.xlu0 %v1148, 20
        %v1156 = vpop.permute.xlu0 %1155
        %vm1161 = vcmask 195744
        %1162 = vst.msk [vmem:[#allocation3] sm:$0xff] %vm1161, %v1150
        %1163 = vst.msk [vmem:[#allocation3 + $0x8] sm:$0xff] %vm1161, %v1152
        %1164 = vst.msk [vmem:[#allocation3 + $0x10] sm:$0xff] %vm1161, %v1154
        %1165 = vst.msk [vmem:[#allocation3 + $0x18] sm:$0xff] %vm1161, %v1156
        %s1166 = scalar_lea.vmem [#allocation2], 144
        %v1167 = vld [vmem:[%s1166] sm:$0xf]
        %v1168 = vld [vmem:[%s1166 + $0xc] sm:$0xf]
        %v1169 = vld [vmem:[%s1166 + $0x18] sm:$0xf]
        %v1170 = vld [vmem:[%s1166 + $0x24] sm:$0xf]
        %v1171 = vld [vmem:[%s1166 + $0x30] sm:$0xf]
        %v1172 = vld [vmem:[%s1166 + $0x3c] sm:$0xf]
        %v1173 = vld [vmem:[%s1166 + $0x48] sm:$0xf]
        %v1174 = vld [vmem:[%s1166 + $0x54] sm:$0xf]
        %v1183 = vunpack.c.l.b16 %v1167
        %v1184 = vunpack.c.l.b16 %v1168
        %v1185 = vunpack.c.l.b16 %v1169
        %v1186 = vunpack.c.l.b16 %v1170
        %v1187 = vunpack.c.l.b16 %v1171
        %v1188 = vunpack.c.l.b16 %v1172
        %v1189 = vunpack.c.l.b16 %v1173
        %v1190 = vunpack.c.l.b16 %v1174
        %v1191 = vpack.c.b16 %v1184, %v1183
        %v1192 = vpack.c.b16 %v1186, %v1185
        %v1193 = vpack.c.b16 %v1188, %v1187
        %v1194 = vpack.c.b16 %v1190, %v1189
        %1195 = vrot.lane.b32.xlu0 %v1191, 24
        %v1196 = vpop.permute.xlu0 %1195
        %1197 = vrot.lane.b32.xlu0 %v1192, 24
        %v1198 = vpop.permute.xlu0 %1197
        %1199 = vrot.lane.b32.xlu0 %v1193, 24
        %v1200 = vpop.permute.xlu0 %1199
        %1201 = vrot.lane.b32.xlu0 %v1194, 24
        %v1202 = vpop.permute.xlu0 %1201
        %vm1207 = vcmask 228544
        %1208 = vst.msk [vmem:[#allocation3] sm:$0xff] %vm1207, %v1196
        %1209 = vst.msk [vmem:[#allocation3 + $0x8] sm:$0xff] %vm1207, %v1198
        %1210 = vst.msk [vmem:[#allocation3 + $0x10] sm:$0xff] %vm1207, %v1200
        %1211 = vst.msk [vmem:[#allocation3 + $0x18] sm:$0xff] %vm1207, %v1202
        %v1212 = vld [vmem:[%s1166] sm:$0x8]
        %v1213 = vld [vmem:[%s1166 + $0x4] sm:$0x7]
        %v1214 = vld [vmem:[%s1166 + $0xc] sm:$0x8]
        %v1215 = vld [vmem:[%s1166 + $0x10] sm:$0x7]
        %v1216 = vld [vmem:[%s1166 + $0x18] sm:$0x8]
        %v1217 = vld [vmem:[%s1166 + $0x1c] sm:$0x7]
        %v1218 = vld [vmem:[%s1166 + $0x24] sm:$0x8]
        %v1219 = vld [vmem:[%s1166 + $0x28] sm:$0x7]
        %v1220 = vld [vmem:[%s1166 + $0x30] sm:$0x8]
        %v1221 = vld [vmem:[%s1166 + $0x34] sm:$0x7]
        %v1222 = vld [vmem:[%s1166 + $0x3c] sm:$0x8]
        %v1223 = vld [vmem:[%s1166 + $0x40] sm:$0x7]
        %v1224 = vld [vmem:[%s1166 + $0x48] sm:$0x8]
        %v1225 = vld [vmem:[%s1166 + $0x4c] sm:$0x7]
        %v1226 = vld [vmem:[%s1166 + $0x54] sm:$0x8]
        %v1227 = vld [vmem:[%s1166 + $0x58] sm:$0x7]
        %v1244 = vrot.slane %v1212, 7
        %v1245 = vrot.slane %v1244, 4
        %v1246 = vrot.slane %v1213, 7
        %v1247 = vsel %vm740, %v1245, %v1246
        %v1248 = vrot.slane %v1214, 7
        %v1249 = vrot.slane %v1248, 4
        %v1250 = vrot.slane %v1215, 7
        %v1251 = vsel %vm740, %v1249, %v1250
        %v1252 = vrot.slane %v1216, 7
        %v1253 = vrot.slane %v1252, 4
        %v1254 = vrot.slane %v1217, 7
        %v1255 = vsel %vm740, %v1253, %v1254
        %v1256 = vrot.slane %v1218, 7
        %v1257 = vrot.slane %v1256, 4
        %v1258 = vrot.slane %v1219, 7
        %v1259 = vsel %vm740, %v1257, %v1258
        %v1260 = vrot.slane %v1220, 7
        %v1261 = vrot.slane %v1260, 4
        %v1262 = vrot.slane %v1221, 7
        %v1263 = vsel %vm740, %v1261, %v1262
        %v1264 = vrot.slane %v1222, 7
        %v1265 = vrot.slane %v1264, 4
        %v1266 = vrot.slane %v1223, 7
        %v1267 = vsel %vm740, %v1265, %v1266
        %v1268 = vrot.slane %v1224, 7
        %v1269 = vrot.slane %v1268, 4
        %v1270 = vrot.slane %v1225, 7
        %v1271 = vsel %vm740, %v1269, %v1270
        %v1272 = vrot.slane %v1226, 7
        %v1273 = vrot.slane %v1272, 4
        %v1274 = vrot.slane %v1227, 7
        %v1275 = vsel %vm740, %v1273, %v1274
        %v1276 = vunpack.c.l.b16 %v1247
        %v1277 = vunpack.c.l.b16 %v1251
        %v1278 = vunpack.c.l.b16 %v1255
        %v1279 = vunpack.c.l.b16 %v1259
        %v1280 = vunpack.c.l.b16 %v1263
        %v1281 = vunpack.c.l.b16 %v1267
        %v1282 = vunpack.c.l.b16 %v1271
        %v1283 = vunpack.c.l.b16 %v1275
        %v1284 = vpack.c.b16 %v1277, %v1276
        %v1285 = vpack.c.b16 %v1279, %v1278
        %v1286 = vpack.c.b16 %v1281, %v1280
        %v1287 = vpack.c.b16 %v1283, %v1282
        %1288 = vrot.lane.b32.xlu0 %v1284, 28
        %v1289 = vpop.permute.xlu0 %1288
        %1290 = vrot.lane.b32.xlu0 %v1285, 28
        %v1291 = vpop.permute.xlu0 %1290
        %1292 = vrot.lane.b32.xlu0 %v1286, 28
        %v1293 = vpop.permute.xlu0 %1292
        %1294 = vrot.lane.b32.xlu0 %v1287, 28
        %v1295 = vpop.permute.xlu0 %1294
        %vm1300 = vcmask 261344
        %1301 = vst.msk [vmem:[#allocation3] sm:$0xff] %vm1300, %v1289
        %1302 = vst.msk [vmem:[#allocation3 + $0x8] sm:$0xff] %vm1300, %v1291
        %1303 = vst.msk [vmem:[#allocation3 + $0x10] sm:$0xff] %vm1300, %v1293
        %1304 = vst.msk [vmem:[#allocation3 + $0x18] sm:$0xff] %vm1300, %v1295
        %v1305 = vld [vmem:[%s1166 + $0x4] sm:$0xc]
        %v1306 = vld [vmem:[%s1166 + $0x8] sm:$0x3]
        %v1307 = vld [vmem:[%s1166 + $0x10] sm:$0xc]
        %v1308 = vld [vmem:[%s1166 + $0x14] sm:$0x3]
        %v1309 = vld [vmem:[%s1166 + $0x1c] sm:$0xc]
        %v1310 = vld [vmem:[%s1166 + $0x20] sm:$0x3]
        %v1311 = vld [vmem:[%s1166 + $0x28] sm:$0xc]
        %v1312 = vld [vmem:[%s1166 + $0x2c] sm:$0x3]
        %v1313 = vld [vmem:[%s1166 + $0x34] sm:$0xc]
        %v1314 = vld [vmem:[%s1166 + $0x38] sm:$0x3]
        %v1315 = vld [vmem:[%s1166 + $0x40] sm:$0xc]
        %v1316 = vld [vmem:[%s1166 + $0x44] sm:$0x3]
        %v1317 = vld [vmem:[%s1166 + $0x4c] sm:$0xc]
        %v1318 = vld [vmem:[%s1166 + $0x50] sm:$0x3]
        %v1319 = vld [vmem:[%s1166 + $0x58] sm:$0xc]
        %v1320 = vld [vmem:[%s1166 + $0x5c] sm:$0x3]
        %v1337 = vrot.slane %v1305, 6
        %v1338 = vrot.slane %v1337, 4
        %v1339 = vrot.slane %v1306, 6
        %v1340 = vsel %vm966, %v1338, %v1339
        %v1341 = vrot.slane %v1307, 6
        %v1342 = vrot.slane %v1341, 4
        %v1343 = vrot.slane %v1308, 6
        %v1344 = vsel %vm966, %v1342, %v1343
        %v1345 = vrot.slane %v1309, 6
        %v1346 = vrot.slane %v1345, 4
        %v1347 = vrot.slane %v1310, 6
        %v1348 = vsel %vm966, %v1346, %v1347
        %v1349 = vrot.slane %v1311, 6
        %v1350 = vrot.slane %v1349, 4
        %v1351 = vrot.slane %v1312, 6
        %v1352 = vsel %vm966, %v1350, %v1351
        %v1353 = vrot.slane %v1313, 6
        %v1354 = vrot.slane %v1353, 4
        %v1355 = vrot.slane %v1314, 6
        %v1356 = vsel %vm966, %v1354, %v1355
        %v1357 = vrot.slane %v1315, 6
        %v1358 = vrot.slane %v1357, 4
        %v1359 = vrot.slane %v1316, 6
        %v1360 = vsel %vm966, %v1358, %v1359
        %v1361 = vrot.slane %v1317, 6
        %v1362 = vrot.slane %v1361, 4
        %v1363 = vrot.slane %v1318, 6
        %v1364 = vsel %vm966, %v1362, %v1363
        %v1365 = vrot.slane %v1319, 6
        %v1366 = vrot.slane %v1365, 4
        %v1367 = vrot.slane %v1320, 6
        %v1368 = vsel %vm966, %v1366, %v1367
        %v1369 = vunpack.c.l.b16 %v1340
        %v1370 = vunpack.c.l.b16 %v1344
        %v1371 = vunpack.c.l.b16 %v1348
        %v1372 = vunpack.c.l.b16 %v1352
        %v1373 = vunpack.c.l.b16 %v1356
        %v1374 = vunpack.c.l.b16 %v1360
        %v1375 = vunpack.c.l.b16 %v1364
        %v1376 = vunpack.c.l.b16 %v1368
        %v1377 = vpack.c.b16 %v1370, %v1369
        %v1378 = vpack.c.b16 %v1372, %v1371
        %v1379 = vpack.c.b16 %v1374, %v1373
        %v1380 = vpack.c.b16 %v1376, %v1375
        %1381 = vrot.lane.b32.xlu0 %v1377, 32
        %v1382 = vpop.permute.xlu0 %1381
        %1383 = vrot.lane.b32.xlu0 %v1378, 32
        %v1384 = vpop.permute.xlu0 %1383
        %1385 = vrot.lane.b32.xlu0 %v1379, 32
        %v1386 = vpop.permute.xlu0 %1385
        %1387 = vrot.lane.b32.xlu0 %v1380, 32
        %v1388 = vpop.permute.xlu0 %1387
        %vm1393 = vcmask 294144
        %1394 = vst.msk [vmem:[#allocation3] sm:$0xff] %vm1393, %v1382
        %1395 = vst.msk [vmem:[#allocation3 + $0x8] sm:$0xff] %vm1393, %v1384
        %1396 = vst.msk [vmem:[#allocation3 + $0x10] sm:$0xff] %vm1393, %v1386
        %1397 = vst.msk [vmem:[#allocation3 + $0x18] sm:$0xff] %vm1393, %v1388
        %v1398 = vld [vmem:[#allocation3] sm:$0xff]
        %v1399 = vld [vmem:[#allocation3 + $0x8] sm:$0xff]
        %v1400 = vld [vmem:[#allocation3 + $0x10] sm:$0xff]
        %v1401 = vld [vmem:[#allocation3 + $0x18] sm:$0xff]
        %v1402 = vld [vmem:[#allocation10] sm:$0xf]
        %v1403 = vld [vmem:[#allocation10 + $0x4] sm:$0xf]
        %v1404 = vld [vmem:[#allocation10 + $0x8] sm:$0xf]
        %v1405 = vld [vmem:[#allocation10 + $0xc] sm:$0xf]
        %v1406 = vld [vmem:[#allocation10 + $0x10] sm:$0x3]
        %v1407 = vld [vmem:[#allocation15] sm:$0x1]
        %v1408 = vlaneseq
        %v1409 = vshrl.u32 %v1408, 7
        %v1410 = vsub.s32 0, %v1409
        %v1411 = vrot.slane %v1407, %v1410
        %v1417 = vunpack.c.l.b16 %v1402
        %v1418 = vunpack.c.l.b16 %v1403
        %v1419 = vunpack.c.l.b16 %v1404
        %v1420 = vunpack.c.l.b16 %v1405
        %v1421 = vunpack.c.l.b16 %v1406
        %v1422 = vpack.c.b16 %v1418, %v1417
        %v1423 = vpack.c.b16 %v1420, %v1419
        %v1424 = vpack.c.b16 %v1421, %v1421
        %vm1427 = vcmask 293888
        %v1429 = vsel %vm1427, %v1398, 0
        %v1432 = vsel %vm1427, %v1399, 0
        %v1435 = vsel %vm1427, %v1400, 0
        %v1438 = vsel %vm1427, %v1401, 0
        %vm1440 = vcmask 1041408
        %v1442 = vsel %vm1440, %v1424, 0
        %1444 = vmatprep.subr.bf16.mxu0 0
        %1445 = vmatpush1.bf16.msra.mxu0 %v1422
        %1446 = vmatprep.subr.bf16.mxu0 0
        %1447 = vmatpush1.bf16.msra.mxu0 %v1423
        %1448 = vmatprep.subr.bf16.mxu0 0
        %1449 = vmatpush1.bf16.msra.mxu0 %v1442
        %1450 = vmatprep.subr.bf16.mxu0 0
        %1451 = vmatpush1.bf16.msra.mxu0 0
        %1452 = vmatprep.subr.bf16.mxu0 0
        %1453 = vmatpush1.bf16.msra.mxu0 0
        %1454 = vmatprep.subr.bf16.mxu0 0
        %1455 = vmatpush1.bf16.msra.mxu0 0
        %1456 = vmatprep.subr.bf16.mxu0 0
        %1457 = vmatpush1.bf16.msra.mxu0 0
        %1458 = vmatprep.subr.bf16.mxu0 0
        %1459 = vmatpush1.bf16.msra.mxu0 0
        %1460 = vmatprep.subr.bf16.mxu0 0
        %1461 = vmatpush1.bf16.msra.mxu0 0
        %1462 = vmatprep.subr.bf16.mxu0 0
        %1463 = vmatpush1.bf16.msra.mxu0 0
        %1464 = vmatprep.subr.bf16.mxu0 0
        %1465 = vmatpush1.bf16.msra.mxu0 0
        %1466 = vmatprep.subr.bf16.mxu0 0
        %1467 = vmatpush1.bf16.msra.mxu0 0
        %1468 = vmatprep.subr.bf16.mxu0 0
        %1469 = vmatpush1.bf16.msra.mxu0 0
        %1470 = vmatprep.subr.bf16.mxu0 0
        %1471 = vmatpush1.bf16.msra.mxu0 0
        %1472 = vmatprep.subr.bf16.mxu0 0
        %1473 = vmatpush1.bf16.msra.mxu0 0
        %1474 = vmatprep.subr.bf16.mxu0 0
        %1475 = vmatpush1.bf16.msra.mxu0 0
        %1476 = vmatprep.mubr.bf16.mxu0 0
        %1477 = vmatmul.mubr.bf16.gmra.mrb[0].mxu0 %v1429
        %v1478 = vpop.f32.mrb[0].mxu0
        %v1479 = vadd.f32 %v1411, %v1478
        %v1480 = vpop.f32.mrb[0].mxu0
        %v1481 = vpop.f32.mrb[0].mxu0
        %v1482 = vadd.f32 %v1411, %v1481
        %v1483 = vpop.f32.mrb[0].mxu0
        %1484 = vmatprep.mubr.bf16.mxu0 0
        %1485 = vmatmul.mubr.bf16.gmra.mrb[0].mxu0 %v1432
        %v1486 = vpop.f32.mrb[0].mxu0
        %v1487 = vadd.f32 %v1411, %v1486
        %v1488 = vpop.f32.mrb[0].mxu0
        %v1489 = vpop.f32.mrb[0].mxu0
        %v1490 = vadd.f32 %v1411, %v1489
        %v1491 = vpop.f32.mrb[0].mxu0
        %1492 = vmatprep.mubr.bf16.mxu0 0
        %1493 = vmatmul.mubr.bf16.gmra.mrb[0].mxu0 %v1435
        %v1494 = vpop.f32.mrb[0].mxu0
        %v1495 = vadd.f32 %v1411, %v1494
        %v1496 = vpop.f32.mrb[0].mxu0
        %v1497 = vpop.f32.mrb[0].mxu0
        %v1498 = vadd.f32 %v1411, %v1497
        %v1499 = vpop.f32.mrb[0].mxu0
        %1500 = vmatprep.mubr.bf16.mxu0 0
        %1501 = vmatmul.mubr.bf16.gmra.mrb[0].mxu0 %v1438
        %v1502 = vpop.f32.mrb[0].mxu0
        %v1503 = vadd.f32 %v1411, %v1502
        %v1504 = vpop.f32.mrb[0].mxu0
        %v1505 = vpop.f32.mrb[0].mxu0
        %v1506 = vadd.f32 %v1411, %v1505
        %v1507 = vpop.f32.mrb[0].mxu0
        %1508 = vdwg.mxu0
        %v1509 = vmax.f32 %v1479, 0.0
        %v1510 = vmax.f32 %v1482, 0.0
        %v1511 = vmax.f32 %v1487, 0.0
        %v1512 = vmax.f32 %v1490, 0.0
        %v1513 = vmax.f32 %v1495, 0.0
        %v1514 = vmax.f32 %v1498, 0.0
        %v1515 = vmax.f32 %v1503, 0.0
        %v1516 = vmax.f32 %v1506, 0.0
        %vm1517 = vcmask 64512
        %v1518 = vsel %vm1517, %v1509, 0.0
        %v1519 = vsel %vm1517, %v1510, 0.0
        %v1520 = vadd.f32 %v1518, %v1519
        %v1521 = vsel %vm1517, %v1511, 0.0
        %v1522 = vadd.f32 %v1520, %v1521
        %v1523 = vsel %vm1517, %v1512, 0.0
        %v1524 = vadd.f32 %v1522, %v1523
        %v1525 = vsel %vm1517, %v1513, 0.0
        %v1526 = vadd.f32 %v1524, %v1525
        %v1527 = vsel %vm1517, %v1514, 0.0
        %v1528 = vadd.f32 %v1526, %v1527
        %v1529 = vsel %vm1517, %v1515, 0.0
        %v1530 = vadd.f32 %v1528, %v1529
        %v1531 = vsel %vm1517, %v1516, 0.0
        %v1532 = vadd.f32 %v1530, %v1531
        %v1533 = vrot.slane %v1532, 4
        %v1534 = vadd.f32 %v1532, %v1533
        %v1535 = vrot.slane %v1534, 2
        %v1536 = vadd.f32 %v1534, %v1535
        %v1537 = vrot.slane %v1536, 1
        %v1538 = vadd.f32 %v1536, %v1537
        %vm1539 = vcmask 57344
        %1540 = vst.msk [vmem:[%s439] sm:$0x1] %vm1539, %v1538
        %v1541 = vmul.f32 %v1509, %v1509
        %v1542 = vmul.f32 %v1510, %v1510
        %v1543 = vmul.f32 %v1511, %v1511
        %v1544 = vmul.f32 %v1512, %v1512
        %v1545 = vmul.f32 %v1513, %v1513
        %v1546 = vmul.f32 %v1514, %v1514
        %v1547 = vmul.f32 %v1515, %v1515
        %v1548 = vmul.f32 %v1516, %v1516
        %v1549 = vsel %vm1517, %v1541, 0.0
        %v1550 = vsel %vm1517, %v1542, 0.0
        %v1551 = vadd.f32 %v1549, %v1550
        %v1552 = vsel %vm1517, %v1543, 0.0
        %v1553 = vadd.f32 %v1551, %v1552
        %v1554 = vsel %vm1517, %v1544, 0.0
        %v1555 = vadd.f32 %v1553, %v1554
        %v1556 = vsel %vm1517, %v1545, 0.0
        %v1557 = vadd.f32 %v1555, %v1556
        %v1558 = vsel %vm1517, %v1546, 0.0
        %v1559 = vadd.f32 %v1557, %v1558
        %v1560 = vsel %vm1517, %v1547, 0.0
        %v1561 = vadd.f32 %v1559, %v1560
        %v1562 = vsel %vm1517, %v1548, 0.0
        %v1563 = vadd.f32 %v1561, %v1562
        %v1564 = vrot.slane %v1563, 4
        %v1565 = vadd.f32 %v1563, %v1564
        %v1566 = vrot.slane %v1565, 2
        %v1567 = vadd.f32 %v1565, %v1566
        %v1568 = vrot.slane %v1567, 1
        %v1569 = vadd.f32 %v1567, %v1568
        %1570 = vst.msk [vmem:[%s445] sm:$0x1] %vm1539, %v1569
        %v1571 = vpack.c.bf16 %v1510, %v1509
        %v1572 = vpack.c.bf16 %v1512, %v1511
        %v1573 = vpack.c.bf16 %v1514, %v1513
        %v1574 = vpack.c.bf16 %v1516, %v1515
        %v1579 = vunpack.c.l.b16 %v1571
        %v1580 = vunpack.c.h.b16 %v1571
        %v1581 = vunpack.c.l.b16 %v1572
        %v1582 = vunpack.c.h.b16 %v1572
        %v1583 = vunpack.c.l.b16 %v1573
        %v1584 = vunpack.c.h.b16 %v1573
        %v1585 = vunpack.c.l.b16 %v1574
        %v1586 = vunpack.c.h.b16 %v1574
        %v1587 = vpack.c.b16 %v1579, %v1579
        %v1588 = vpack.c.b16 %v1580, %v1580
        %v1589 = vpack.c.b16 %v1581, %v1581
        %v1590 = vpack.c.b16 %v1582, %v1582
        %v1591 = vpack.c.b16 %v1583, %v1583
        %v1592 = vpack.c.b16 %v1584, %v1584
        %v1593 = vpack.c.b16 %v1585, %v1585
        %v1594 = vpack.c.b16 %v1586, %v1586
        %vm1603 = vcmask 60416
        %1604 = vst.msk [vmem:[%s433] sm:$0xf] %vm1603, %v1587
        %1605 = vst.msk [vmem:[%s433 + $0x4] sm:$0xf] %vm1603, %v1588
        %1606 = vst.msk [vmem:[%s433 + $0x8] sm:$0xf] %vm1603, %v1589
        %1607 = vst.msk [vmem:[%s433 + $0xc] sm:$0xf] %vm1603, %v1590
        %1608 = vst.msk [vmem:[%s433 + $0x10] sm:$0xf] %vm1603, %v1591
        %1609 = vst.msk [vmem:[%s433 + $0x14] sm:$0xf] %vm1603, %v1592
        %1610 = vst.msk [vmem:[%s433 + $0x18] sm:$0xf] %vm1603, %v1593
        %1611 = vst.msk [vmem:[%s433 + $0x1c] sm:$0xf] %vm1603, %v1594
        %v1612 = vld [vmem:[#allocation3] sm:$0xff]
        %v1613 = vld [vmem:[#allocation3 + $0x8] sm:$0xff]
        %v1614 = vld [vmem:[#allocation3 + $0x10] sm:$0xff]
        %v1615 = vld [vmem:[#allocation3 + $0x18] sm:$0xff]
        %v1616 = vld [vmem:[#allocation12] sm:$0x3]
        %v1617 = vld [vmem:[#allocation15 + $0x1] sm:$0x1]
        %v1618 = vlaneseq
        %v1619 = vshrl.u32 %v1618, 7
        %v1620 = vsub.s32 0, %v1619
        %v1621 = vrot.slane %v1617, %v1620
        %v1623 = vsel %vm789, %v1612, 0
        %v1626 = vsel %vm789, %v1613, 0
        %v1629 = vsel %vm789, %v1614, 0
        %v1632 = vsel %vm789, %v1615, 0
        %v1635 = vsel %vm1440, %v1616, 0
        %1637 = vmatprep.subr.bf16.mxu0 0
        %1638 = vmatpush1.bf16.msra.mxu0 %v1635
        %1639 = vmatprep.subr.bf16.mxu0 0
        %1640 = vmatpush1.bf16.msra.mxu0 0
        %1641 = vmatprep.subr.bf16.mxu0 0
        %1642 = vmatpush1.bf16.msra.mxu0 0
        %1643 = vmatprep.subr.bf16.mxu0 0
        %1644 = vmatpush1.bf16.msra.mxu0 0
        %1645 = vmatprep.subr.bf16.mxu0 0
        %1646 = vmatpush1.bf16.msra.mxu0 0
        %1647 = vmatprep.subr.bf16.mxu0 0
        %1648 = vmatpush1.bf16.msra.mxu0 0
        %1649 = vmatprep.subr.bf16.mxu0 0
        %1650 = vmatpush1.bf16.msra.mxu0 0
        %1651 = vmatprep.subr.bf16.mxu0 0
        %1652 = vmatpush1.bf16.msra.mxu0 0
        %1653 = vmatprep.subr.bf16.mxu0 0
        %1654 = vmatpush1.bf16.msra.mxu0 0
        %1655 = vmatprep.subr.bf16.mxu0 0
        %1656 = vmatpush1.bf16.msra.mxu0 0
        %1657 = vmatprep.subr.bf16.mxu0 0
        %1658 = vmatpush1.bf16.msra.mxu0 0
        %1659 = vmatprep.subr.bf16.mxu0 0
        %1660 = vmatpush1.bf16.msra.mxu0 0
        %1661 = vmatprep.subr.bf16.mxu0 0
        %1662 = vmatpush1.bf16.msra.mxu0 0
        %1663 = vmatprep.subr.bf16.mxu0 0
        %1664 = vmatpush1.bf16.msra.mxu0 0
        %1665 = vmatprep.subr.bf16.mxu0 0
        %1666 = vmatpush1.bf16.msra.mxu0 0
        %1667 = vmatprep.subr.bf16.mxu0 0
        %1668 = vmatpush1.bf16.msra.mxu0 0
        %1669 = vmatprep.mubr.bf16.mxu0 0
        %1670 = vmatmul.mubr.bf16.gmra.mrb[0].mxu0 %v1623
        %v1671 = vpop.f32.mrb[0].mxu0
        %v1672 = vadd.f32 %v1621, %v1671
        %v1673 = vpop.f32.mrb[0].mxu0
        %v1674 = vpop.f32.mrb[0].mxu0
        %v1675 = vadd.f32 %v1621, %v1674
        %v1676 = vpop.f32.mrb[0].mxu0
        %1677 = vmatprep.mubr.bf16.mxu0 0
        %1678 = vmatmul.mubr.bf16.gmra.mrb[0].mxu0 %v1626
        %v1679 = vpop.f32.mrb[0].mxu0
        %v1680 = vadd.f32 %v1621, %v1679
        %v1681 = vpop.f32.mrb[0].mxu0
        %v1682 = vpop.f32.mrb[0].mxu0
        %v1683 = vadd.f32 %v1621, %v1682
        %v1684 = vpop.f32.mrb[0].mxu0
        %1685 = vmatprep.mubr.bf16.mxu0 0
        %1686 = vmatmul.mubr.bf16.gmra.mrb[0].mxu0 %v1629
        %v1687 = vpop.f32.mrb[0].mxu0
        %v1688 = vadd.f32 %v1621, %v1687
        %v1689 = vpop.f32.mrb[0].mxu0
        %v1690 = vpop.f32.mrb[0].mxu0
        %v1691 = vadd.f32 %v1621, %v1690
        %v1692 = vpop.f32.mrb[0].mxu0
        %1693 = vmatprep.mubr.bf16.mxu0 0
        %1694 = vmatmul.mubr.bf16.gmra.mrb[0].mxu0 %v1632
        %v1695 = vpop.f32.mrb[0].mxu0
        %v1696 = vadd.f32 %v1621, %v1695
        %v1697 = vpop.f32.mrb[0].mxu0
        %v1698 = vpop.f32.mrb[0].mxu0
        %v1699 = vadd.f32 %v1621, %v1698
        %v1700 = vpop.f32.mrb[0].mxu0
        %1701 = vdwg.mxu0
        %v1702 = vmax.f32 %v1672, 0.0
        %v1703 = vmax.f32 %v1675, 0.0
        %v1704 = vmax.f32 %v1680, 0.0
        %v1705 = vmax.f32 %v1683, 0.0
        %v1706 = vmax.f32 %v1688, 0.0
        %v1707 = vmax.f32 %v1691, 0.0
        %v1708 = vmax.f32 %v1696, 0.0
        %v1709 = vmax.f32 %v1699, 0.0
        %v1710 = vsel %vm1517, %v1702, 0.0
        %v1711 = vsel %vm1517, %v1703, 0.0
        %v1712 = vadd.f32 %v1710, %v1711
        %v1713 = vsel %vm1517, %v1704, 0.0
        %v1714 = vadd.f32 %v1712, %v1713
        %v1715 = vsel %vm1517, %v1705, 0.0
        %v1716 = vadd.f32 %v1714, %v1715
        %v1717 = vsel %vm1517, %v1706, 0.0
        %v1718 = vadd.f32 %v1716, %v1717
        %v1719 = vsel %vm1517, %v1707, 0.0
        %v1720 = vadd.f32 %v1718, %v1719
        %v1721 = vsel %vm1517, %v1708, 0.0
        %v1722 = vadd.f32 %v1720, %v1721
        %v1723 = vsel %vm1517, %v1709, 0.0
        %v1724 = vadd.f32 %v1722, %v1723
        %v1725 = vrot.slane %v1724, 4
        %v1726 = vadd.f32 %v1724, %v1725
        %v1727 = vrot.slane %v1726, 2
        %v1728 = vadd.f32 %v1726, %v1727
        %v1729 = vrot.slane %v1728, 1
        %v1730 = vadd.f32 %v1728, %v1729
        %1732 = vrot.lane.b32.xlu0 %v1730, 8
        %v1733 = vpop.permute.xlu0 %1732
        %vm1735 = vcmask 122944
        %1736 = vst.msk [vmem:[%s439] sm:$0x1] %vm1735, %v1733
        %v1737 = vmul.f32 %v1702, %v1702
        %v1738 = vmul.f32 %v1703, %v1703
        %v1739 = vmul.f32 %v1704, %v1704
        %v1740 = vmul.f32 %v1705, %v1705
        %v1741 = vmul.f32 %v1706, %v1706
        %v1742 = vmul.f32 %v1707, %v1707
        %v1743 = vmul.f32 %v1708, %v1708
        %v1744 = vmul.f32 %v1709, %v1709
        %v1745 = vsel %vm1517, %v1737, 0.0
        %v1746 = vsel %vm1517, %v1738, 0.0
        %v1747 = vadd.f32 %v1745, %v1746
        %v1748 = vsel %vm1517, %v1739, 0.0
        %v1749 = vadd.f32 %v1747, %v1748
        %v1750 = vsel %vm1517, %v1740, 0.0
        %v1751 = vadd.f32 %v1749, %v1750
        %v1752 = vsel %vm1517, %v1741, 0.0
        %v1753 = vadd.f32 %v1751, %v1752
        %v1754 = vsel %vm1517, %v1742, 0.0
        %v1755 = vadd.f32 %v1753, %v1754
        %v1756 = vsel %vm1517, %v1743, 0.0
        %v1757 = vadd.f32 %v1755, %v1756
        %v1758 = vsel %vm1517, %v1744, 0.0
        %v1759 = vadd.f32 %v1757, %v1758
        %v1760 = vrot.slane %v1759, 4
        %v1761 = vadd.f32 %v1759, %v1760
        %v1762 = vrot.slane %v1761, 2
        %v1763 = vadd.f32 %v1761, %v1762
        %v1764 = vrot.slane %v1763, 1
        %v1765 = vadd.f32 %v1763, %v1764
        %1767 = vrot.lane.b32.xlu0 %v1765, 8
        %v1768 = vpop.permute.xlu0 %1767
        %1770 = vst.msk [vmem:[%s445] sm:$0x1] %vm1735, %v1768
        %v1771 = vpack.c.bf16 %v1703, %v1702
        %v1772 = vpack.c.bf16 %v1705, %v1704
        %v1773 = vpack.c.bf16 %v1707, %v1706
        %v1774 = vpack.c.bf16 %v1709, %v1708
        %v1779 = vunpack.c.l.b16 %v1771
        %v1780 = vunpack.c.h.b16 %v1771
        %v1781 = vunpack.c.l.b16 %v1772
        %v1782 = vunpack.c.h.b16 %v1772
        %v1783 = vunpack.c.l.b16 %v1773
        %v1784 = vunpack.c.h.b16 %v1773
        %v1785 = vunpack.c.l.b16 %v1774
        %v1786 = vunpack.c.h.b16 %v1774
        %v1787 = vpack.c.b16 %v1779, %v1779
        %v1788 = vpack.c.b16 %v1780, %v1780
        %v1789 = vpack.c.b16 %v1781, %v1781
        %v1790 = vpack.c.b16 %v1782, %v1782
        %v1791 = vpack.c.b16 %v1783, %v1783
        %v1792 = vpack.c.b16 %v1784, %v1784
        %v1793 = vpack.c.b16 %v1785, %v1785
        %v1794 = vpack.c.b16 %v1786, %v1786
        %1795 = vrot.lane.b32.xlu0 %v1787, 8
        %v1796 = vpop.permute.xlu0 %1795
        %1797 = vrot.lane.b32.xlu0 %v1788, 8
        %v1798 = vpop.permute.xlu0 %1797
        %1799 = vrot.lane.b32.xlu0 %v1789, 8
        %v1800 = vpop.permute.xlu0 %1799
        %1801 = vrot.lane.b32.xlu0 %v1790, 8
        %v1802 = vpop.permute.xlu0 %1801
        %1803 = vrot.lane.b32.xlu0 %v1791, 8
        %v1804 = vpop.permute.xlu0 %1803
        %1805 = vrot.lane.b32.xlu0 %v1792, 8
        %v1806 = vpop.permute.xlu0 %1805
        %1807 = vrot.lane.b32.xlu0 %v1793, 8
        %v1808 = vpop.permute.xlu0 %1807
        %1809 = vrot.lane.b32.xlu0 %v1794, 8
        %v1810 = vpop.permute.xlu0 %1809
        %vm1819 = vcmask 126016
        %1820 = vst.msk [vmem:[%s433] sm:$0xf] %vm1819, %v1796
        %1821 = vst.msk [vmem:[%s433 + $0x4] sm:$0xf] %vm1819, %v1798
        %1822 = vst.msk [vmem:[%s433 + $0x8] sm:$0xf] %vm1819, %v1800
        %1823 = vst.msk [vmem:[%s433 + $0xc] sm:$0xf] %vm1819, %v1802
        %1824 = vst.msk [vmem:[%s433 + $0x10] sm:$0xf] %vm1819, %v1804
        %1825 = vst.msk [vmem:[%s433 + $0x14] sm:$0xf] %vm1819, %v1806
        %1826 = vst.msk [vmem:[%s433 + $0x18] sm:$0xf] %vm1819, %v1808
        %1827 = vst.msk [vmem:[%s433 + $0x1c] sm:$0xf] %vm1819, %v1810
        %v1828 = vld [vmem:[#allocation3] sm:$0xff]
        %v1829 = vld [vmem:[#allocation3 + $0x8] sm:$0xff]
        %v1830 = vld [vmem:[#allocation3 + $0x10] sm:$0xff]
        %v1831 = vld [vmem:[#allocation3 + $0x18] sm:$0xff]
        %v1832 = vld [vmem:[#allocation13] sm:$0x3]
        %v1833 = vld [vmem:[#allocation15 + $0x2] sm:$0x1]
        %v1834 = vlaneseq
        %v1835 = vshrl.u32 %v1834, 7
        %v1836 = vsub.s32 0, %v1835
        %v1837 = vrot.slane %v1833, %v1836
        %v1839 = vsel %vm789, %v1828, 0
        %v1842 = vsel %vm789, %v1829, 0
        %v1845 = vsel %vm789, %v1830, 0
        %v1848 = vsel %vm789, %v1831, 0
        %v1851 = vsel %vm1440, %v1832, 0
        %1853 = vmatprep.subr.bf16.mxu0 0
        %1854 = vmatpush1.bf16.msra.mxu0 %v1851
        %1855 = vmatprep.subr.bf16.mxu0 0
        %1856 = vmatpush1.bf16.msra.mxu0 0
        %1857 = vmatprep.subr.bf16.mxu0 0
        %1858 = vmatpush1.bf16.msra.mxu0 0
        %1859 = vmatprep.subr.bf16.mxu0 0
        %1860 = vmatpush1.bf16.msra.mxu0 0
        %1861 = vmatprep.subr.bf16.mxu0 0
        %1862 = vmatpush1.bf16.msra.mxu0 0
        %1863 = vmatprep.subr.bf16.mxu0 0
        %1864 = vmatpush1.bf16.msra.mxu0 0
        %1865 = vmatprep.subr.bf16.mxu0 0
        %1866 = vmatpush1.bf16.msra.mxu0 0
        %1867 = vmatprep.subr.bf16.mxu0 0
        %1868 = vmatpush1.bf16.msra.mxu0 0
        %1869 = vmatprep.subr.bf16.mxu0 0
        %1870 = vmatpush1.bf16.msra.mxu0 0
        %1871 = vmatprep.subr.bf16.mxu0 0
        %1872 = vmatpush1.bf16.msra.mxu0 0
        %1873 = vmatprep.subr.bf16.mxu0 0
        %1874 = vmatpush1.bf16.msra.mxu0 0
        %1875 = vmatprep.subr.bf16.mxu0 0
        %1876 = vmatpush1.bf16.msra.mxu0 0
        %1877 = vmatprep.subr.bf16.mxu0 0
        %1878 = vmatpush1.bf16.msra.mxu0 0
        %1879 = vmatprep.subr.bf16.mxu0 0
        %1880 = vmatpush1.bf16.msra.mxu0 0
        %1881 = vmatprep.subr.bf16.mxu0 0
        %1882 = vmatpush1.bf16.msra.mxu0 0
        %1883 = vmatprep.subr.bf16.mxu0 0
        %1884 = vmatpush1.bf16.msra.mxu0 0
        %1885 = vmatprep.mubr.bf16.mxu0 0
        %1886 = vmatmul.mubr.bf16.gmra.mrb[0].mxu0 %v1839
        %v1887 = vpop.f32.mrb[0].mxu0
        %v1888 = vadd.f32 %v1837, %v1887
        %v1889 = vpop.f32.mrb[0].mxu0
        %v1890 = vpop.f32.mrb[0].mxu0
        %v1891 = vadd.f32 %v1837, %v1890
        %v1892 = vpop.f32.mrb[0].mxu0
        %1893 = vmatprep.mubr.bf16.mxu0 0
        %1894 = vmatmul.mubr.bf16.gmra.mrb[0].mxu0 %v1842
        %v1895 = vpop.f32.mrb[0].mxu0
        %v1896 = vadd.f32 %v1837, %v1895
        %v1897 = vpop.f32.mrb[0].mxu0
        %v1898 = vpop.f32.mrb[0].mxu0
        %v1899 = vadd.f32 %v1837, %v1898
        %v1900 = vpop.f32.mrb[0].mxu0
        %1901 = vmatprep.mubr.bf16.mxu0 0
        %1902 = vmatmul.mubr.bf16.gmra.mrb[0].mxu0 %v1845
        %v1903 = vpop.f32.mrb[0].mxu0
        %v1904 = vadd.f32 %v1837, %v1903
        %v1905 = vpop.f32.mrb[0].mxu0
        %v1906 = vpop.f32.mrb[0].mxu0
        %v1907 = vadd.f32 %v1837, %v1906
        %v1908 = vpop.f32.mrb[0].mxu0
        %1909 = vmatprep.mubr.bf16.mxu0 0
        %1910 = vmatmul.mubr.bf16.gmra.mrb[0].mxu0 %v1848
        %v1911 = vpop.f32.mrb[0].mxu0
        %v1912 = vadd.f32 %v1837, %v1911
        %v1913 = vpop.f32.mrb[0].mxu0
        %v1914 = vpop.f32.mrb[0].mxu0
        %v1915 = vadd.f32 %v1837, %v1914
        %v1916 = vpop.f32.mrb[0].mxu0
        %1917 = vdwg.mxu0
        %v1918 = vmax.f32 %v1888, 0.0
        %v1919 = vmax.f32 %v1891, 0.0
        %v1920 = vmax.f32 %v1896, 0.0
        %v1921 = vmax.f32 %v1899, 0.0
        %v1922 = vmax.f32 %v1904, 0.0
        %v1923 = vmax.f32 %v1907, 0.0
        %v1924 = vmax.f32 %v1912, 0.0
        %v1925 = vmax.f32 %v1915, 0.0
        %v1926 = vsel %vm1517, %v1918, 0.0
        %v1927 = vsel %vm1517, %v1919, 0.0
        %v1928 = vadd.f32 %v1926, %v1927
        %v1929 = vsel %vm1517, %v1920, 0.0
        %v1930 = vadd.f32 %v1928, %v1929
        %v1931 = vsel %vm1517, %v1921, 0.0
        %v1932 = vadd.f32 %v1930, %v1931
        %v1933 = vsel %vm1517, %v1922, 0.0
        %v1934 = vadd.f32 %v1932, %v1933
        %v1935 = vsel %vm1517, %v1923, 0.0
        %v1936 = vadd.f32 %v1934, %v1935
        %v1937 = vsel %vm1517, %v1924, 0.0
        %v1938 = vadd.f32 %v1936, %v1937
        %v1939 = vsel %vm1517, %v1925, 0.0
        %v1940 = vadd.f32 %v1938, %v1939
        %v1941 = vrot.slane %v1940, 4
        %v1942 = vadd.f32 %v1940, %v1941
        %v1943 = vrot.slane %v1942, 2
        %v1944 = vadd.f32 %v1942, %v1943
        %v1945 = vrot.slane %v1944, 1
        %v1946 = vadd.f32 %v1944, %v1945
        %1948 = vrot.lane.b32.xlu0 %v1946, 16
        %v1949 = vpop.permute.xlu0 %1948
        %vm1951 = vcmask 188544
        %1952 = vst.msk [vmem:[%s439] sm:$0x1] %vm1951, %v1949
        %v1953 = vmul.f32 %v1918, %v1918
        %v1954 = vmul.f32 %v1919, %v1919
        %v1955 = vmul.f32 %v1920, %v1920
        %v1956 = vmul.f32 %v1921, %v1921
        %v1957 = vmul.f32 %v1922, %v1922
        %v1958 = vmul.f32 %v1923, %v1923
        %v1959 = vmul.f32 %v1924, %v1924
        %v1960 = vmul.f32 %v1925, %v1925
        %v1961 = vsel %vm1517, %v1953, 0.0
        %v1962 = vsel %vm1517, %v1954, 0.0
        %v1963 = vadd.f32 %v1961, %v1962
        %v1964 = vsel %vm1517, %v1955, 0.0
        %v1965 = vadd.f32 %v1963, %v1964
        %v1966 = vsel %vm1517, %v1956, 0.0
        %v1967 = vadd.f32 %v1965, %v1966
        %v1968 = vsel %vm1517, %v1957, 0.0
        %v1969 = vadd.f32 %v1967, %v1968
        %v1970 = vsel %vm1517, %v1958, 0.0
        %v1971 = vadd.f32 %v1969, %v1970
        %v1972 = vsel %vm1517, %v1959, 0.0
        %v1973 = vadd.f32 %v1971, %v1972
        %v1974 = vsel %vm1517, %v1960, 0.0
        %v1975 = vadd.f32 %v1973, %v1974
        %v1976 = vrot.slane %v1975, 4
        %v1977 = vadd.f32 %v1975, %v1976
        %v1978 = vrot.slane %v1977, 2
        %v1979 = vadd.f32 %v1977, %v1978
        %v1980 = vrot.slane %v1979, 1
        %v1981 = vadd.f32 %v1979, %v1980
        %1983 = vrot.lane.b32.xlu0 %v1981, 16
        %v1984 = vpop.permute.xlu0 %1983
        %1986 = vst.msk [vmem:[%s445] sm:$0x1] %vm1951, %v1984
        %v1987 = vpack.c.bf16 %v1919, %v1918
        %v1988 = vpack.c.bf16 %v1921, %v1920
        %v1989 = vpack.c.bf16 %v1923, %v1922
        %v1990 = vpack.c.bf16 %v1925, %v1924
        %v1995 = vunpack.c.l.b16 %v1987
        %v1996 = vunpack.c.h.b16 %v1987
        %v1997 = vunpack.c.l.b16 %v1988
        %v1998 = vunpack.c.h.b16 %v1988
        %v1999 = vunpack.c.l.b16 %v1989
        %v2000 = vunpack.c.h.b16 %v1989
        %v2001 = vunpack.c.l.b16 %v1990
        %v2002 = vunpack.c.h.b16 %v1990
        %v2003 = vpack.c.b16 %v1995, %v1995
        %v2004 = vpack.c.b16 %v1996, %v1996
        %v2005 = vpack.c.b16 %v1997, %v1997
        %v2006 = vpack.c.b16 %v1998, %v1998
        %v2007 = vpack.c.b16 %v1999, %v1999
        %v2008 = vpack.c.b16 %v2000, %v2000
        %v2009 = vpack.c.b16 %v2001, %v2001
        %v2010 = vpack.c.b16 %v2002, %v2002
        %2011 = vrot.lane.b32.xlu0 %v2003, 16
        %v2012 = vpop.permute.xlu0 %2011
        %2013 = vrot.lane.b32.xlu0 %v2004, 16
        %v2014 = vpop.permute.xlu0 %2013
        %2015 = vrot.lane.b32.xlu0 %v2005, 16
        %v2016 = vpop.permute.xlu0 %2015
        %2017 = vrot.lane.b32.xlu0 %v2006, 16
        %v2018 = vpop.permute.xlu0 %2017
        %2019 = vrot.lane.b32.xlu0 %v2007, 16
        %v2020 = vpop.permute.xlu0 %2019
        %2021 = vrot.lane.b32.xlu0 %v2008, 16
        %v2022 = vpop.permute.xlu0 %2021
        %2023 = vrot.lane.b32.xlu0 %v2009, 16
        %v2024 = vpop.permute.xlu0 %2023
        %2025 = vrot.lane.b32.xlu0 %v2010, 16
        %v2026 = vpop.permute.xlu0 %2025
        %vm2035 = vcmask 191616
        %2036 = vst.msk [vmem:[%s433] sm:$0xf] %vm2035, %v2012
        %2037 = vst.msk [vmem:[%s433 + $0x4] sm:$0xf] %vm2035, %v2014
        %2038 = vst.msk [vmem:[%s433 + $0x8] sm:$0xf] %vm2035, %v2016
        %2039 = vst.msk [vmem:[%s433 + $0xc] sm:$0xf] %vm2035, %v2018
        %2040 = vst.msk [vmem:[%s433 + $0x10] sm:$0xf] %vm2035, %v2020
        %2041 = vst.msk [vmem:[%s433 + $0x14] sm:$0xf] %vm2035, %v2022
        %2042 = vst.msk [vmem:[%s433 + $0x18] sm:$0xf] %vm2035, %v2024
        %2043 = vst.msk [vmem:[%s433 + $0x1c] sm:$0xf] %vm2035, %v2026
        %s2044 = sand.u32 %s193, 1
        %s2045 = scalar_lea.sflag [#allocation6], %s2044
        %s2046 = sand.u32 %s193, 1
        %s2047 = smul.addr %s2046, 32
        %s2048 = scalar_lea.vmem [#allocation16], %s2047
        %s2049 = sand.u32 %s33, 1
        %s2050 = scalar_lea.sflag [#allocation18], %s2049
        %s2051 = sand.u32 %s219, 1
        %s2052 = scalar_lea.vmem [#allocation17], %s2051
        %s2053 = sand.u32 %s33, 1
        %s2054 = scalar_lea.sflag [#allocation18], %s2053
        %s2055 = sand.u32 %s245, 1
        %s2056 = scalar_lea.vmem [#allocation19], %s2055
        // Predicated region
        $region77: #{tpu_custom_call.1} parent=47 // pred_check
          %p2057 = pneg %p203
        $region78: #{tpu_custom_call.1} parent=47 // pred_check_branch
          %2059 = sbr.rel (%p2057) target = $region80
        $region79: #{tpu_custom_call.1} parent=47 // pred_region
          %s2061 = ssub.s32 512, 512
          %2062 = vsyncadd %s2045, %s2061
          %s2063 = smul.addr %s33, 8
          %s2064 = smul.addr %s2063, 64
          %s2065 = scalar_lea.hbm %s7, %s2064
          %s2066 = sshll.u32 %s2048, 4
          %s2067 = int_to_ptr.vmem [resolvable:$true] %s2066
          %2072 = dma.vmem_to_hbm [thread:$0]  %s2067, 512, %s2065, %s2045, 64, 64, 4
        $region80: #{tpu_custom_call.1} parent=47 // pred_fallthru
          _
        // Predicated region
        $region81: #{tpu_custom_call.1} parent=47 // pred_check
          %p2073 = pneg %p229
        $region82: #{tpu_custom_call.1} parent=47 // pred_check_branch
          %2075 = sbr.rel (%p2073) target = $region84
        $region83: #{tpu_custom_call.1} parent=47 // pred_region
          %s2077 = ssub.s32 16, 16
          %2078 = vsyncadd %s2050, %s2077
          %s2079 = smul.addr %s33, 16
          %s2080 = scalar_lea.hbm %s8, %s2079
          %s2082 = sshll.u32 %s2052, 4
          %s2083 = int_to_ptr.vmem [resolvable:$true] %s2082
          %2085 = dma.vmem_to_hbm [thread:$0]  %s2083, 16, %s2080, %s2050
        $region84: #{tpu_custom_call.1} parent=47 // pred_fallthru
          _
        // Predicated region
        $region85: #{tpu_custom_call.1} parent=47 // pred_check
          %p2086 = pneg %p255
        $region86: #{tpu_custom_call.1} parent=47 // pred_check_branch
          %2088 = sbr.rel (%p2086) target = $region88
        $region87: #{tpu_custom_call.1} parent=47 // pred_region
          %s2090 = ssub.s32 16, 16
          %2091 = vsyncadd %s2054, %s2090
          %s2092 = smul.addr %s33, 16
          %s2093 = scalar_lea.hbm %s9, %s2092
          %s2095 = sshll.u32 %s2056, 4
          %s2096 = int_to_ptr.vmem [resolvable:$true] %s2095
          %2098 = dma.vmem_to_hbm [thread:$0]  %s2096, 16, %s2093, %s2054
        $region88: #{tpu_custom_call.1} parent=47 // pred_fallthru
          _
      $region48: #{tpu_custom_call.1} parent=5 // pred_fallthru
        _
      %p2099 = scmp.le.s32.totalorder 2, %s28
      // Predicated region
      $region89: #{tpu_custom_call.1} parent=5 // pred_check
        %p2100 = pneg %p2099
      $region90: #{tpu_custom_call.1} parent=5 // pred_check_branch
        %2102 = sbr.rel (%p2100) target = $region92
      $region91: #{tpu_custom_call.1} parent=5 // pred_region
        %s2103 = ssub.s32 %s28, 2
        // Predicated region
        $region93: #{tpu_custom_call.1} parent=91 // pred_check
          %p2104 = pneg %p209
        $region94: #{tpu_custom_call.1} parent=91 // pred_check_branch
          %2106 = sbr.rel (%p2104) target = $region96
        $region95: #{tpu_custom_call.1} parent=91 // pred_region
          %s2107 = sand.u32 %s194, 1
          %s2108 = scalar_lea.sflag [#allocation6], %s2107
          %s2109 = sand.u32 %s194, 1
          %s2110 = smul.addr %s2109, 32
          %s2111 = scalar_lea.vmem [#allocation16], %s2110
          %2112 = dma.done %s2108, 512
        $region96: #{tpu_custom_call.1} parent=91 // pred_fallthru
          _
        // Predicated region
        $region97: #{tpu_custom_call.1} parent=91 // pred_check
          %p2113 = pneg %p235
        $region98: #{tpu_custom_call.1} parent=91 // pred_check_branch
          %2115 = sbr.rel (%p2113) target = $region100
        $region99: #{tpu_custom_call.1} parent=91 // pred_region
          %s2116 = sand.u32 %s34, 1
          %s2117 = scalar_lea.sflag [#allocation18], %s2116
          %s2118 = sand.u32 %s220, 1
          %s2119 = scalar_lea.vmem [#allocation17], %s2118
          %2120 = dma.done %s2117, 16
        $region100: #{tpu_custom_call.1} parent=91 // pred_fallthru
          _
        // Predicated region
        $region101: #{tpu_custom_call.1} parent=91 // pred_check
          %p2121 = pneg %p261
        $region102: #{tpu_custom_call.1} parent=91 // pred_check_branch
          %2123 = sbr.rel (%p2121) target = $region104
        $region103: #{tpu_custom_call.1} parent=91 // pred_region
          %s2124 = sand.u32 %s34, 1
          %s2125 = scalar_lea.sflag [#allocation18], %s2124
          %s2126 = sand.u32 %s246, 1
          %s2127 = scalar_lea.vmem [#allocation19], %s2126
          %2128 = dma.done %s2125, 16
        $region104: #{tpu_custom_call.1} parent=91 // pred_fallthru
          _
      $region92: #{tpu_custom_call.1} parent=5 // pred_fallthru
        _
    $region6: #{tpu_custom_call.1} parent=1 // loop_footer
      %s32 = sadd.s32 1, %s28
    $region7: #{tpu_custom_call.1} parent=1 // loop_footer_branch
      %27 = sbr.rel target = $region3
    $region8: #{tpu_custom_call.1} parent=1 // loop_exit
      _
    %2129 = vsyncpa [#allocation5], 1
    %s2130 = scalar_lea.sflag [#allocation5], 1
    %2131 = vsyncpa %s2130, 1
    %2132 = vsyncpa [#allocation8], 1
    %2133 = vsyncpa [#allocation11], 1
    %2134 = vsyncpa [#allocation14], 1
    %2135 = vsyncpa [#allocation6], 1
    %s2136 = scalar_lea.sflag [#allocation6], 1
    %2137 = vsyncpa %s2136, 1
    %2138 = vsyncpa [#allocation18], 1
    %s2139 = scalar_lea.sflag [#allocation18], 1
    %2140 = vsyncpa %s2139, 1

</llo_original>
